<compile_context>
chip_gen: v5e
topology: v5e:2x2
jax: 0.10.0
libtpu: 0.0.40
codegen_flags: <defaults>
</compile_context>

<pallas_src>
import functools

import jax
import jax.numpy as jnp
from jax import lax
from jax.experimental import pallas as pl
from jax.experimental.pallas import tpu as pltpu


def _encoder_layer_kernel(x_ref, ln1w_ref, ln1b_ref,
                          wqkv_ref, bqkv_ref,
                          wo_ref, bo_ref, ln2w_ref, ln2b_ref,
                          w1_ref, b1_ref, w2_ref, b2_ref,
                          out_ref, *, num_heads, head_dim, scale, eps):
    f32 = jnp.float32
    x = x_ref[...].astype(f32)                       # (S, D)
    mm_dtype = wqkv_ref.dtype                        # bf16 fast path if weights are bf16
    D = num_heads * head_dim

    def layer_norm(v, w_ref, b_ref):
        mu = jnp.mean(v, axis=-1, keepdims=True)
        c = v - mu
        var = jnp.mean(c * c, axis=-1, keepdims=True)
        n = c * lax.rsqrt(var + eps)
        return n * w_ref[...].astype(f32) + b_ref[...].astype(f32)

    # ---- LayerNorm 1 + fused QKV projection (single matmul) ----------------
    h = layer_norm(x, ln1w_ref, ln1b_ref)
    hm = h.astype(mm_dtype)
    qkv = (jnp.dot(hm, wqkv_ref[...], preferred_element_type=f32)
           + bqkv_ref[...].astype(f32))              # (S, 3D)
    q = qkv[:, 0 * D:1 * D] * scale                  # PyTorch scales after bias
    k = qkv[:, 1 * D:2 * D]
    v = qkv[:, 2 * D:3 * D]

    # ---- Per-head attention; out-projection accumulated per head -----------
    attn = None
    for h_i in range(num_heads):
        lo = h_i * head_dim
        hi = lo + head_dim
        qh = q[:, lo:hi].astype(mm_dtype)            # (S, hd)
        kh = k[:, lo:hi].astype(mm_dtype)            # (S, hd)
        vh = v[:, lo:hi].astype(mm_dtype)            # (S, hd)
        # scores = q @ k^T, contraction on head_dim (no materialized transpose)
        s = lax.dot_general(qh, kh, (((1,), (1,)), ((), ())),
                            preferred_element_type=f32)        # (S, S)
        s = s - jnp.max(s, axis=-1, keepdims=True)
        e = jnp.exp(s)
        probs = e * pl.reciprocal(jnp.sum(e, axis=-1, keepdims=True),
                                  approx=False)
        ctx_h = jnp.dot(probs.astype(mm_dtype), vh,
                        preferred_element_type=f32)             # (S, hd)
        contrib = jnp.dot(ctx_h.astype(mm_dtype), wo_ref[lo:hi, :],
                          preferred_element_type=f32)           # (S, D)
        attn = contrib if attn is None else attn + contrib
    attn = attn + bo_ref[...].astype(f32)

    r1 = x + attn                                    # residual (f32)

    # ---- LayerNorm 2 + MLP (quick_gelu) -------------------------------------
    g = layer_norm(r1, ln2w_ref, ln2b_ref)
    f1 = jnp.dot(g.astype(mm_dtype), w1_ref[...],
                 preferred_element_type=f32) + b1_ref[...].astype(f32)
    f1 = f1 * jax.nn.sigmoid(1.702 * f1)             # quick_gelu
    f2 = jnp.dot(f1.astype(mm_dtype), w2_ref[...],
                 preferred_element_type=f32) + b2_ref[...].astype(f32)

    # Single full-block, lane-dense store; cast once at the end.
    out_ref[...] = (r1 + f2).astype(out_ref.dtype)


def clip_encoder_layer(x, p, *, num_heads, eps):
    """x: [B, S, D]; p: dict of PyTorch-layout weights ([out, in]) + biases."""
    B, S, D = x.shape
    inter = p["fc1_w"].shape[0]
    head_dim = D // num_heads
    scale = float(head_dim) ** -0.5

    # Pre-transpose Linear weights to [in, out]; fuse Q/K/V into one operand.
    wqkv = jnp.concatenate([p["q_w"].T, p["k_w"].T, p["v_w"].T], axis=1)  # (D, 3D)
    bqkv = jnp.concatenate([p["q_b"], p["k_b"], p["v_b"]]).reshape(1, 3 * D)
    wo = p["o_w"].T
    w1, w2 = p["fc1_w"].T, p["fc2_w"].T
    bo = p["o_b"].reshape(1, D)
    b1 = p["fc1_b"].reshape(1, inter)
    b2 = p["fc2_b"].reshape(1, D)
    ln1w, ln1b = p["ln1_w"].reshape(1, D), p["ln1_b"].reshape(1, D)
    ln2w, ln2b = p["ln2_w"].reshape(1, D), p["ln2_b"].reshape(1, D)

    consts = [ln1w, ln1b, wqkv, bqkv, wo, bo, ln2w, ln2b, w1, b1, w2, b2]

    kernel = functools.partial(_encoder_layer_kernel, num_heads=num_heads,
                               head_dim=head_dim, scale=scale, eps=float(eps))

    def const_spec(a):
        nd = a.ndim
        return pl.BlockSpec(a.shape, lambda b, _nd=nd: (0,) * _nd)

    x_spec = pl.BlockSpec((pl.Squeezed(), S, D), lambda b: (b, 0, 0))
    out_spec = pl.BlockSpec((pl.Squeezed(), S, D), lambda b: (b, 0, 0))

    # Explicit VMEM budget, capped at v7x physical VMEM (64 MiB).
    per_step_bytes = 2 * S * D * x.dtype.itemsize + sum(a.nbytes for a in consts)
    vmem_limit = int(min(64 << 20, max(16 << 20, 3 * per_step_bytes)))

    return pl.pallas_call(
        kernel,
        out_shape=jax.ShapeDtypeStruct((B, S, D), x.dtype),
        grid=(B,),
        in_specs=[x_spec] + [const_spec(a) for a in consts],
        out_specs=out_spec,
        compiler_params=pltpu.CompilerParams(
            dimension_semantics=("parallel",),
            vmem_limit_bytes=vmem_limit,
        ),
    )(x, *consts)


def clip_encoder_forward(inputs_embeds, layer_params, *, num_heads, eps):
    """Matches CLIPEncoder.forward: returns the tuple of per-layer *input*
    hidden states (the final layer's output is never returned, so it is not
    computed)."""
    encoder_states = []
    h = inputs_embeds
    n = len(layer_params)
    for i, p in enumerate(layer_params):
        encoder_states.append(h)
        if i < n - 1:
            h = clip_encoder_layer(h, p, num_heads=num_heads, eps=eps)
    return tuple(encoder_states)


# ----------------------------- pure-JAX reference ----------------------------
def _reference_encoder(inputs_embeds, layer_params, *, num_heads, eps):
    def ln(v, w, b):
        mu = v.mean(-1, keepdims=True)
        c = v - mu
        var = (c * c).mean(-1, keepdims=True)
        return c / jnp.sqrt(var + eps) * w + b

    def layer(x, p):
        B, S, D = x.shape
        hd = D // num_heads
        h = ln(x, p["ln1_w"], p["ln1_b"])
        q = (h @ p["q_w"].T + p["q_b"]) * (hd ** -0.5)
        k = h @ p["k_w"].T + p["k_b"]
        v = h @ p["v_w"].T + p["v_b"]

        def split(t):
            return t.reshape(B, S, num_heads, hd).transpose(0, 2, 1, 3)

        qh, kh, vh = split(q), split(k), split(v)
        s = jnp.einsum("bhqd,bhkd->bhqk", qh, kh)
        a = jax.nn.softmax(s, axis=-1)
        ctx = jnp.einsum("bhqk,bhkd->bhqd", a, vh)
        ctx = ctx.transpose(0, 2, 1, 3).reshape(B, S, D)
        attn = ctx @ p["o_w"].T + p["o_b"]
        x = x + attn
        g = ln(x, p["ln2_w"], p["ln2_b"])
        f = g @ p["fc1_w"].T + p["fc1_b"]
        f = f * jax.nn.sigmoid(1.702 * f)
        m = f @ p["fc2_w"].T + p["fc2_b"]
        return x + m

    states = []
    h = inputs_embeds
    for p in layer_params:
        states.append(h)
        h = layer(h, p)
    return tuple(states)


def _init_layer_params(key, D, inter):
    ks = jax.random.split(key, 10)

    def lin(k, out_f, in_f):
        kw, kb = jax.random.split(k)
        w = jax.random.normal(kw, (out_f, in_f), jnp.float32) / (in_f ** 0.5)
        b = 0.02 * jax.random.normal(kb, (out_f,), jnp.float32)
        return w, b

    q_w, q_b = lin(ks[0], D, D)
    k_w, k_b = lin(ks[1], D, D)
    v_w, v_b = lin(ks[2], D, D)
    o_w, o_b = lin(ks[3], D, D)
    fc1_w, fc1_b = lin(ks[4], inter, D)
    fc2_w, fc2_b = lin(ks[5], D, inter)
    ln1_w = 1.0 + 0.1 * jax.random.normal(ks[6], (D,), jnp.float32)
    ln1_b = 0.02 * jax.random.normal(ks[7], (D,), jnp.float32)
    ln2_w = 1.0 + 0.1 * jax.random.normal(ks[8], (D,), jnp.float32)
    ln2_b = 0.02 * jax.random.normal(ks[9], (D,), jnp.float32)
    return dict(q_w=q_w, q_b=q_b, k_w=k_w, k_b=k_b, v_w=v_w, v_b=v_b,
                o_w=o_w, o_b=o_b, fc1_w=fc1_w, fc1_b=fc1_b,
                fc2_w=fc2_w, fc2_b=fc2_b,
                ln1_w=ln1_w, ln1_b=ln1_b, ln2_w=ln2_w, ln2_b=ln2_b)


if __name__ == "__main__":
    # Config: batch=2, seq=8, hidden=32, heads=4, intermediate=64, layers=3
    B, S, D = 2, 8, 32
    NUM_HEADS = 4
    INTERMEDIATE = 64
    NUM_LAYERS = 3
    EPS = 1e-5

    key = jax.random.PRNGKey(0)
    k_x, k_p = jax.random.split(key)
    inputs_embeds = jax.random.normal(k_x, (B, S, D), dtype=jnp.float32)
    layer_keys = jax.random.split(k_p, NUM_LAYERS)
    layer_params = [_init_layer_params(k, D, INTERMEDIATE) for k in layer_keys]

    out_states = clip_encoder_forward(inputs_embeds, layer_params,
                                      num_heads=NUM_HEADS, eps=EPS)
    out = jax.block_until_ready(jnp.stack(out_states))

    with jax.default_matmul_precision("highest"):
        ref_states = _reference_encoder(inputs_embeds, layer_params,
                                        num_heads=NUM_HEADS, eps=EPS)
    ref = jnp.stack(ref_states)

    assert out.shape == (NUM_LAYERS, B, S, D)
    err = float(jnp.max(jnp.abs(out - ref)))
    assert jnp.allclose(out, ref, atol=1e-3, rtol=1e-3), \
        f"mismatch vs reference (max abs err {err})"

    print("KERNEL_OK")
</pallas_src>

<mosaic_0001>
module attributes {stable_mosaic.version = 11 : i64} {
  func.func @_encoder_layer_kernel(%arg0: i32, %arg1: memref<1x8x32xf32, #tpu.memory_space<vmem>>, %arg2: memref<1x32xf32, #tpu.memory_space<vmem>>, %arg3: memref<1x32xf32, #tpu.memory_space<vmem>>, %arg4: memref<32x96xf32, #tpu.memory_space<vmem>>, %arg5: memref<1x96xf32, #tpu.memory_space<vmem>>, %arg6: memref<32x32xf32, #tpu.memory_space<vmem>>, %arg7: memref<1x32xf32, #tpu.memory_space<vmem>>, %arg8: memref<1x32xf32, #tpu.memory_space<vmem>>, %arg9: memref<1x32xf32, #tpu.memory_space<vmem>>, %arg10: memref<32x64xf32, #tpu.memory_space<vmem>>, %arg11: memref<1x64xf32, #tpu.memory_space<vmem>>, %arg12: memref<64x32xf32, #tpu.memory_space<vmem>>, %arg13: memref<1x32xf32, #tpu.memory_space<vmem>>, %arg14: memref<1x8x32xf32, #tpu.memory_space<vmem>>) attributes {dimension_semantics = [#tpu.dimension_semantics<parallel>], iteration_bounds = array<i64: 2>, scalar_prefetch = 0 : i64, scratch_operands = 0 : i64, tpu.core_type = #tpu.core_type<tc>, window_params = [{transform_indices = @transform_0, window_bounds = array<i64: 1, 8, 32>}, {pipeline_mode = #tpu.pipeline_mode<synchronous>, transform_indices = @transform_1, window_bounds = array<i64: 1, 32>}, {pipeline_mode = #tpu.pipeline_mode<synchronous>, transform_indices = @transform_2, window_bounds = array<i64: 1, 32>}, {pipeline_mode = #tpu.pipeline_mode<synchronous>, transform_indices = @transform_3, window_bounds = array<i64: 32, 96>}, {pipeline_mode = #tpu.pipeline_mode<synchronous>, transform_indices = @transform_4, window_bounds = array<i64: 1, 96>}, {pipeline_mode = #tpu.pipeline_mode<synchronous>, transform_indices = @transform_5, window_bounds = array<i64: 32, 32>}, {pipeline_mode = #tpu.pipeline_mode<synchronous>, transform_indices = @transform_6, window_bounds = array<i64: 1, 32>}, {pipeline_mode = #tpu.pipeline_mode<synchronous>, transform_indices = @transform_7, window_bounds = array<i64: 1, 32>}, {pipeline_mode = #tpu.pipeline_mode<synchronous>, transform_indices = @transform_8, window_bounds = array<i64: 1, 32>}, {pipeline_mode = #tpu.pipeline_mode<synchronous>, transform_indices = @transform_9, window_bounds = array<i64: 32, 64>}, {pipeline_mode = #tpu.pipeline_mode<synchronous>, transform_indices = @transform_10, window_bounds = array<i64: 1, 64>}, {pipeline_mode = #tpu.pipeline_mode<synchronous>, transform_indices = @transform_11, window_bounds = array<i64: 64, 32>}, {pipeline_mode = #tpu.pipeline_mode<synchronous>, transform_indices = @transform_12, window_bounds = array<i64: 1, 32>}, {transform_indices = @transform_13, window_bounds = array<i64: 1, 8, 32>}]} {
    %c0 = arith.constant 0 : index
    %c0_0 = arith.constant 0 : index
    %c0_1 = arith.constant 0 : index
    %0 = vector.load %arg1[%c0, %c0_0, %c0_1] : memref<1x8x32xf32, #tpu.memory_space<vmem>>, vector<1x8x32xf32>
    %1 = vector.shape_cast %0 : vector<1x8x32xf32> to vector<8x32xf32>
    %cst = arith.constant dense<0.000000e+00> : vector<8xf32>
    %2 = vector.multi_reduction <add>, %1, %cst [1] : vector<8x32xf32> to vector<8xf32>
    %3 = vector.shape_cast %2 : vector<8xf32> to vector<8x1xf32>
    %cst_2 = arith.constant 3.200000e+01 : f32
    %4 = vector.broadcast %cst_2 : f32 to vector<8x1xf32>
    %5 = arith.divf %3, %4 : vector<8x1xf32>
    %6 = vector.broadcast %5 : vector<8x1xf32> to vector<8x32xf32>
    %7 = arith.subf %1, %6 : vector<8x32xf32>
    %8 = arith.mulf %7, %7 : vector<8x32xf32>
    %cst_3 = arith.constant dense<0.000000e+00> : vector<8xf32>
    %9 = vector.multi_reduction <add>, %8, %cst_3 [1] : vector<8x32xf32> to vector<8xf32>
    %10 = vector.shape_cast %9 : vector<8xf32> to vector<8x1xf32>
    %cst_4 = arith.constant 3.200000e+01 : f32
    %11 = vector.broadcast %cst_4 : f32 to vector<8x1xf32>
    %12 = arith.divf %10, %11 : vector<8x1xf32>
    %cst_5 = arith.constant 9.99999974E-6 : f32
    %13 = vector.broadcast %cst_5 : f32 to vector<8x1xf32>
    %14 = arith.addf %12, %13 : vector<8x1xf32>
    %15 = math.rsqrt %14 : vector<8x1xf32>
    %16 = vector.broadcast %15 : vector<8x1xf32> to vector<8x32xf32>
    %17 = arith.mulf %7, %16 : vector<8x32xf32>
    %c0_6 = arith.constant 0 : index
    %c0_7 = arith.constant 0 : index
    %18 = vector.load %arg2[%c0_6, %c0_7] : memref<1x32xf32, #tpu.memory_space<vmem>>, vector<1x32xf32>
    %19 = vector.broadcast %18 : vector<1x32xf32> to vector<8x32xf32>
    %20 = arith.mulf %17, %19 : vector<8x32xf32>
    %c0_8 = arith.constant 0 : index
    %c0_9 = arith.constant 0 : index
    %21 = vector.load %arg3[%c0_8, %c0_9] : memref<1x32xf32, #tpu.memory_space<vmem>>, vector<1x32xf32>
    %22 = vector.broadcast %21 : vector<1x32xf32> to vector<8x32xf32>
    %23 = arith.addf %20, %22 : vector<8x32xf32>
    %c0_10 = arith.constant 0 : index
    %c0_11 = arith.constant 0 : index
    %24 = vector.load %arg4[%c0_10, %c0_11] : memref<32x96xf32, #tpu.memory_space<vmem>>, vector<32x96xf32>
    %cst_12 = arith.constant dense<0.000000e+00> : vector<8x96xf32>
    %25 = tpu.matmul %23, %24, %cst_12 {dimension_numbers = #tpu.dot_dimension_numbers<[1], [0], [0], [1], [0, 0, 1, 1], [], []>} : vector<8x32xf32>, vector<32x96xf32>, vector<8x96xf32> -> vector<8x96xf32>
    %c0_13 = arith.constant 0 : index
    %c0_14 = arith.constant 0 : index
    %26 = vector.load %arg5[%c0_13, %c0_14] : memref<1x96xf32, #tpu.memory_space<vmem>>, vector<1x96xf32>
    %27 = vector.broadcast %26 : vector<1x96xf32> to vector<8x96xf32>
    %28 = arith.addf %25, %27 : vector<8x96xf32>
    %29 = vector.extract_strided_slice %28 {offsets = [0, 0], sizes = [8, 32], strides = [1, 1]} : vector<8x96xf32> to vector<8x32xf32>
    %cst_15 = arith.constant 0.353553385 : f32
    %30 = vector.broadcast %cst_15 : f32 to vector<8x32xf32>
    %31 = arith.mulf %29, %30 : vector<8x32xf32>
    %32 = vector.extract_strided_slice %28 {offsets = [0, 32], sizes = [8, 32], strides = [1, 1]} : vector<8x96xf32> to vector<8x32xf32>
    %33 = vector.extract_strided_slice %28 {offsets = [0, 64], sizes = [8, 32], strides = [1, 1]} : vector<8x96xf32> to vector<8x32xf32>
    %34 = vector.extract_strided_slice %31 {offsets = [0, 0], sizes = [8, 8], strides = [1, 1]} : vector<8x32xf32> to vector<8x8xf32>
    %35 = vector.extract_strided_slice %32 {offsets = [0, 0], sizes = [8, 8], strides = [1, 1]} : vector<8x32xf32> to vector<8x8xf32>
    %36 = vector.extract_strided_slice %33 {offsets = [0, 0], sizes = [8, 8], strides = [1, 1]} : vector<8x32xf32> to vector<8x8xf32>
    %cst_16 = arith.constant dense<0.000000e+00> : vector<8x8xf32>
    %37 = tpu.matmul %34, %35, %cst_16 {dimension_numbers = #tpu.dot_dimension_numbers<[1], [1], [0], [0], [0, 0, 1, 0], [], []>} : vector<8x8xf32>, vector<8x8xf32>, vector<8x8xf32> -> vector<8x8xf32>
    %cst_17 = arith.constant dense<0xFF800000> : vector<8xf32>
    %38 = vector.multi_reduction <maximumf>, %37, %cst_17 [1] : vector<8x8xf32> to vector<8xf32>
    %39 = vector.shape_cast %38 : vector<8xf32> to vector<8x1xf32>
    %40 = vector.broadcast %39 : vector<8x1xf32> to vector<8x8xf32>
    %41 = arith.subf %37, %40 : vector<8x8xf32>
    %42 = math.exp %41 : vector<8x8xf32>
    %cst_18 = arith.constant dense<0.000000e+00> : vector<8xf32>
    %43 = vector.multi_reduction <add>, %42, %cst_18 [1] : vector<8x8xf32> to vector<8xf32>
    %44 = vector.shape_cast %43 : vector<8xf32> to vector<8x1xf32>
    %45 = tpu.reciprocal %44 : vector<8x1xf32> -> vector<8x1xf32>
    %46 = vector.broadcast %45 : vector<8x1xf32> to vector<8x8xf32>
    %47 = arith.mulf %42, %46 : vector<8x8xf32>
    %cst_19 = arith.constant dense<0.000000e+00> : vector<8x8xf32>
    %48 = tpu.matmul %47, %36, %cst_19 {dimension_numbers = #tpu.dot_dimension_numbers<[1], [0], [0], [1], [0, 0, 1, 1], [], []>} : vector<8x8xf32>, vector<8x8xf32>, vector<8x8xf32> -> vector<8x8xf32>
    %c0_20 = arith.constant 0 : index
    %c0_21 = arith.constant 0 : index
    %49 = vector.load %arg6[%c0_20, %c0_21] : memref<32x32xf32, #tpu.memory_space<vmem>>, vector<8x32xf32>
    %cst_22 = arith.constant dense<0.000000e+00> : vector<8x32xf32>
    %50 = tpu.matmul %48, %49, %cst_22 {dimension_numbers = #tpu.dot_dimension_numbers<[1], [0], [0], [1], [0, 0, 1, 1], [], []>} : vector<8x8xf32>, vector<8x32xf32>, vector<8x32xf32> -> vector<8x32xf32>
    %51 = vector.extract_strided_slice %31 {offsets = [0, 8], sizes = [8, 8], strides = [1, 1]} : vector<8x32xf32> to vector<8x8xf32>
    %52 = vector.extract_strided_slice %32 {offsets = [0, 8], sizes = [8, 8], strides = [1, 1]} : vector<8x32xf32> to vector<8x8xf32>
    %53 = vector.extract_strided_slice %33 {offsets = [0, 8], sizes = [8, 8], strides = [1, 1]} : vector<8x32xf32> to vector<8x8xf32>
    %cst_23 = arith.constant dense<0.000000e+00> : vector<8x8xf32>
    %54 = tpu.matmul %51, %52, %cst_23 {dimension_numbers = #tpu.dot_dimension_numbers<[1], [1], [0], [0], [0, 0, 1, 0], [], []>} : vector<8x8xf32>, vector<8x8xf32>, vector<8x8xf32> -> vector<8x8xf32>
    %cst_24 = arith.constant dense<0xFF800000> : vector<8xf32>
    %55 = vector.multi_reduction <maximumf>, %54, %cst_24 [1] : vector<8x8xf32> to vector<8xf32>
    %56 = vector.shape_cast %55 : vector<8xf32> to vector<8x1xf32>
    %57 = vector.broadcast %56 : vector<8x1xf32> to vector<8x8xf32>
    %58 = arith.subf %54, %57 : vector<8x8xf32>
    %59 = math.exp %58 : vector<8x8xf32>
    %cst_25 = arith.constant dense<0.000000e+00> : vector<8xf32>
    %60 = vector.multi_reduction <add>, %59, %cst_25 [1] : vector<8x8xf32> to vector<8xf32>
    %61 = vector.shape_cast %60 : vector<8xf32> to vector<8x1xf32>
    %62 = tpu.reciprocal %61 : vector<8x1xf32> -> vector<8x1xf32>
    %63 = vector.broadcast %62 : vector<8x1xf32> to vector<8x8xf32>
    %64 = arith.mulf %59, %63 : vector<8x8xf32>
    %cst_26 = arith.constant dense<0.000000e+00> : vector<8x8xf32>
    %65 = tpu.matmul %64, %53, %cst_26 {dimension_numbers = #tpu.dot_dimension_numbers<[1], [0], [0], [1], [0, 0, 1, 1], [], []>} : vector<8x8xf32>, vector<8x8xf32>, vector<8x8xf32> -> vector<8x8xf32>
    %c8 = arith.constant 8 : index
    %c0_27 = arith.constant 0 : index
    %66 = vector.load %arg6[%c8, %c0_27] : memref<32x32xf32, #tpu.memory_space<vmem>>, vector<8x32xf32>
    %cst_28 = arith.constant dense<0.000000e+00> : vector<8x32xf32>
    %67 = tpu.matmul %65, %66, %cst_28 {dimension_numbers = #tpu.dot_dimension_numbers<[1], [0], [0], [1], [0, 0, 1, 1], [], []>} : vector<8x8xf32>, vector<8x32xf32>, vector<8x32xf32> -> vector<8x32xf32>
    %68 = arith.addf %50, %67 : vector<8x32xf32>
    %69 = vector.extract_strided_slice %31 {offsets = [0, 16], sizes = [8, 8], strides = [1, 1]} : vector<8x32xf32> to vector<8x8xf32>
    %70 = vector.extract_strided_slice %32 {offsets = [0, 16], sizes = [8, 8], strides = [1, 1]} : vector<8x32xf32> to vector<8x8xf32>
    %71 = vector.extract_strided_slice %33 {offsets = [0, 16], sizes = [8, 8], strides = [1, 1]} : vector<8x32xf32> to vector<8x8xf32>
    %cst_29 = arith.constant dense<0.000000e+00> : vector<8x8xf32>
    %72 = tpu.matmul %69, %70, %cst_29 {dimension_numbers = #tpu.dot_dimension_numbers<[1], [1], [0], [0], [0, 0, 1, 0], [], []>} : vector<8x8xf32>, vector<8x8xf32>, vector<8x8xf32> -> vector<8x8xf32>
    %cst_30 = arith.constant dense<0xFF800000> : vector<8xf32>
    %73 = vector.multi_reduction <maximumf>, %72, %cst_30 [1] : vector<8x8xf32> to vector<8xf32>
    %74 = vector.shape_cast %73 : vector<8xf32> to vector<8x1xf32>
    %75 = vector.broadcast %74 : vector<8x1xf32> to vector<8x8xf32>
    %76 = arith.subf %72, %75 : vector<8x8xf32>
    %77 = math.exp %76 : vector<8x8xf32>
    %cst_31 = arith.constant dense<0.000000e+00> : vector<8xf32>
    %78 = vector.multi_reduction <add>, %77, %cst_31 [1] : vector<8x8xf32> to vector<8xf32>
    %79 = vector.shape_cast %78 : vector<8xf32> to vector<8x1xf32>
    %80 = tpu.reciprocal %79 : vector<8x1xf32> -> vector<8x1xf32>
    %81 = vector.broadcast %80 : vector<8x1xf32> to vector<8x8xf32>
    %82 = arith.mulf %77, %81 : vector<8x8xf32>
    %cst_32 = arith.constant dense<0.000000e+00> : vector<8x8xf32>
    %83 = tpu.matmul %82, %71, %cst_32 {dimension_numbers = #tpu.dot_dimension_numbers<[1], [0], [0], [1], [0, 0, 1, 1], [], []>} : vector<8x8xf32>, vector<8x8xf32>, vector<8x8xf32> -> vector<8x8xf32>
    %c16 = arith.constant 16 : index
    %c0_33 = arith.constant 0 : index
    %84 = vector.load %arg6[%c16, %c0_33] : memref<32x32xf32, #tpu.memory_space<vmem>>, vector<8x32xf32>
    %cst_34 = arith.constant dense<0.000000e+00> : vector<8x32xf32>
    %85 = tpu.matmul %83, %84, %cst_34 {dimension_numbers = #tpu.dot_dimension_numbers<[1], [0], [0], [1], [0, 0, 1, 1], [], []>} : vector<8x8xf32>, vector<8x32xf32>, vector<8x32xf32> -> vector<8x32xf32>
    %86 = arith.addf %68, %85 : vector<8x32xf32>
    %87 = vector.extract_strided_slice %31 {offsets = [0, 24], sizes = [8, 8], strides = [1, 1]} : vector<8x32xf32> to vector<8x8xf32>
    %88 = vector.extract_strided_slice %32 {offsets = [0, 24], sizes = [8, 8], strides = [1, 1]} : vector<8x32xf32> to vector<8x8xf32>
    %89 = vector.extract_strided_slice %33 {offsets = [0, 24], sizes = [8, 8], strides = [1, 1]} : vector<8x32xf32> to vector<8x8xf32>
    %cst_35 = arith.constant dense<0.000000e+00> : vector<8x8xf32>
    %90 = tpu.matmul %87, %88, %cst_35 {dimension_numbers = #tpu.dot_dimension_numbers<[1], [1], [0], [0], [0, 0, 1, 0], [], []>} : vector<8x8xf32>, vector<8x8xf32>, vector<8x8xf32> -> vector<8x8xf32>
    %cst_36 = arith.constant dense<0xFF800000> : vector<8xf32>
    %91 = vector.multi_reduction <maximumf>, %90, %cst_36 [1] : vector<8x8xf32> to vector<8xf32>
    %92 = vector.shape_cast %91 : vector<8xf32> to vector<8x1xf32>
    %93 = vector.broadcast %92 : vector<8x1xf32> to vector<8x8xf32>
    %94 = arith.subf %90, %93 : vector<8x8xf32>
    %95 = math.exp %94 : vector<8x8xf32>
    %cst_37 = arith.constant dense<0.000000e+00> : vector<8xf32>
    %96 = vector.multi_reduction <add>, %95, %cst_37 [1] : vector<8x8xf32> to vector<8xf32>
    %97 = vector.shape_cast %96 : vector<8xf32> to vector<8x1xf32>
    %98 = tpu.reciprocal %97 : vector<8x1xf32> -> vector<8x1xf32>
    %99 = vector.broadcast %98 : vector<8x1xf32> to vector<8x8xf32>
    %100 = arith.mulf %95, %99 : vector<8x8xf32>
    %cst_38 = arith.constant dense<0.000000e+00> : vector<8x8xf32>
    %101 = tpu.matmul %100, %89, %cst_38 {dimension_numbers = #tpu.dot_dimension_numbers<[1], [0], [0], [1], [0, 0, 1, 1], [], []>} : vector<8x8xf32>, vector<8x8xf32>, vector<8x8xf32> -> vector<8x8xf32>
    %c24 = arith.constant 24 : index
    %c0_39 = arith.constant 0 : index
    %102 = vector.load %arg6[%c24, %c0_39] : memref<32x32xf32, #tpu.memory_space<vmem>>, vector<8x32xf32>
    %cst_40 = arith.constant dense<0.000000e+00> : vector<8x32xf32>
    %103 = tpu.matmul %101, %102, %cst_40 {dimension_numbers = #tpu.dot_dimension_numbers<[1], [0], [0], [1], [0, 0, 1, 1], [], []>} : vector<8x8xf32>, vector<8x32xf32>, vector<8x32xf32> -> vector<8x32xf32>
    %104 = arith.addf %86, %103 : vector<8x32xf32>
    %c0_41 = arith.constant 0 : index
    %c0_42 = arith.constant 0 : index
    %105 = vector.load %arg7[%c0_41, %c0_42] : memref<1x32xf32, #tpu.memory_space<vmem>>, vector<1x32xf32>
    %106 = vector.broadcast %105 : vector<1x32xf32> to vector<8x32xf32>
    %107 = arith.addf %104, %106 : vector<8x32xf32>
    %108 = arith.addf %1, %107 : vector<8x32xf32>
    %cst_43 = arith.constant dense<0.000000e+00> : vector<8xf32>
    %109 = vector.multi_reduction <add>, %108, %cst_43 [1] : vector<8x32xf32> to vector<8xf32>
    %110 = vector.shape_cast %109 : vector<8xf32> to vector<8x1xf32>
    %cst_44 = arith.constant 3.200000e+01 : f32
    %111 = vector.broadcast %cst_44 : f32 to vector<8x1xf32>
    %112 = arith.divf %110, %111 : vector<8x1xf32>
    %113 = vector.broadcast %112 : vector<8x1xf32> to vector<8x32xf32>
    %114 = arith.subf %108, %113 : vector<8x32xf32>
    %115 = arith.mulf %114, %114 : vector<8x32xf32>
    %cst_45 = arith.constant dense<0.000000e+00> : vector<8xf32>
    %116 = vector.multi_reduction <add>, %115, %cst_45 [1] : vector<8x32xf32> to vector<8xf32>
    %117 = vector.shape_cast %116 : vector<8xf32> to vector<8x1xf32>
    %cst_46 = arith.constant 3.200000e+01 : f32
    %118 = vector.broadcast %cst_46 : f32 to vector<8x1xf32>
    %119 = arith.divf %117, %118 : vector<8x1xf32>
    %cst_47 = arith.constant 9.99999974E-6 : f32
    %120 = vector.broadcast %cst_47 : f32 to vector<8x1xf32>
    %121 = arith.addf %119, %120 : vector<8x1xf32>
    %122 = math.rsqrt %121 : vector<8x1xf32>
    %123 = vector.broadcast %122 : vector<8x1xf32> to vector<8x32xf32>
    %124 = arith.mulf %114, %123 : vector<8x32xf32>
    %c0_48 = arith.constant 0 : index
    %c0_49 = arith.constant 0 : index
    %125 = vector.load %arg8[%c0_48, %c0_49] : memref<1x32xf32, #tpu.memory_space<vmem>>, vector<1x32xf32>
    %126 = vector.broadcast %125 : vector<1x32xf32> to vector<8x32xf32>
    %127 = arith.mulf %124, %126 : vector<8x32xf32>
    %c0_50 = arith.constant 0 : index
    %c0_51 = arith.constant 0 : index
    %128 = vector.load %arg9[%c0_50, %c0_51] : memref<1x32xf32, #tpu.memory_space<vmem>>, vector<1x32xf32>
    %129 = vector.broadcast %128 : vector<1x32xf32> to vector<8x32xf32>
    %130 = arith.addf %127, %129 : vector<8x32xf32>
    %c0_52 = arith.constant 0 : index
    %c0_53 = arith.constant 0 : index
    %131 = vector.load %arg10[%c0_52, %c0_53] : memref<32x64xf32, #tpu.memory_space<vmem>>, vector<32x64xf32>
    %cst_54 = arith.constant dense<0.000000e+00> : vector<8x64xf32>
    %132 = tpu.matmul %130, %131, %cst_54 {dimension_numbers = #tpu.dot_dimension_numbers<[1], [0], [0], [1], [0, 0, 1, 1], [], []>} : vector<8x32xf32>, vector<32x64xf32>, vector<8x64xf32> -> vector<8x64xf32>
    %c0_55 = arith.constant 0 : index
    %c0_56 = arith.constant 0 : index
    %133 = vector.load %arg11[%c0_55, %c0_56] : memref<1x64xf32, #tpu.memory_space<vmem>>, vector<1x64xf32>
    %134 = vector.broadcast %133 : vector<1x64xf32> to vector<8x64xf32>
    %135 = arith.addf %132, %134 : vector<8x64xf32>
    %cst_57 = arith.constant 1.702000e+00 : f32
    %136 = vector.broadcast %cst_57 : f32 to vector<8x64xf32>
    %137 = arith.mulf %136, %135 : vector<8x64xf32>
    %138 = arith.negf %137 : vector<8x64xf32>
    %139 = math.exp %138 : vector<8x64xf32>
    %cst_58 = arith.constant 1.000000e+00 : f32
    %140 = vector.broadcast %cst_58 : f32 to vector<8x64xf32>
    %141 = arith.addf %140, %139 : vector<8x64xf32>
    %142 = arith.divf %140, %141 : vector<8x64xf32>
    %143 = arith.mulf %135, %142 : vector<8x64xf32>
    %c0_59 = arith.constant 0 : index
    %c0_60 = arith.constant 0 : index
    %144 = vector.load %arg12[%c0_59, %c0_60] : memref<64x32xf32, #tpu.memory_space<vmem>>, vector<64x32xf32>
    %cst_61 = arith.constant dense<0.000000e+00> : vector<8x32xf32>
    %145 = tpu.matmul %143, %144, %cst_61 {dimension_numbers = #tpu.dot_dimension_numbers<[1], [0], [0], [1], [0, 0, 1, 1], [], []>} : vector<8x64xf32>, vector<64x32xf32>, vector<8x32xf32> -> vector<8x32xf32>
    %c0_62 = arith.constant 0 : index
    %c0_63 = arith.constant 0 : index
    %146 = vector.load %arg13[%c0_62, %c0_63] : memref<1x32xf32, #tpu.memory_space<vmem>>, vector<1x32xf32>
    %147 = vector.broadcast %146 : vector<1x32xf32> to vector<8x32xf32>
    %148 = arith.addf %145, %147 : vector<8x32xf32>
    %149 = arith.addf %108, %148 : vector<8x32xf32>
    %c0_64 = arith.constant 0 : index
    %c0_65 = arith.constant 0 : index
    %c0_66 = arith.constant 0 : index
    %150 = vector.load %arg14[%c0_64, %c0_65, %c0_66] : memref<1x8x32xf32, #tpu.memory_space<vmem>>, vector<1x8x32xf32>
    %151 = vector.shape_cast %150 : vector<1x8x32xf32> to vector<8x32xf32>
    %152 = vector.shape_cast %149 : vector<8x32xf32> to vector<1x8x32xf32>
    tpu.vector_store %arg14[%c0_64, %c0_65, %c0_66], %152 {strides = array<i32>} : memref<1x8x32xf32, #tpu.memory_space<vmem>>, vector<1x8x32xf32>,
    return
  }
  func.func @transform_0(%arg0: i32) -> (i32, i32, i32) {
    %c0_i32 = arith.constant 0 : i32
    %c0_i32_0 = arith.constant 0 : i32
    %c0_i32_1 = arith.constant 0 : i32
    return %arg0, %c0_i32, %c0_i32_0 : i32, i32, i32
  }
  func.func @transform_1(%arg0: i32) -> (i32, i32) {
    %c0_i32 = arith.constant 0 : i32
    %c0_i32_0 = arith.constant 0 : i32
    %c0_i32_1 = arith.constant 0 : i32
    return %c0_i32, %c0_i32_0 : i32, i32
  }
  func.func @transform_2(%arg0: i32) -> (i32, i32) {
    %c0_i32 = arith.constant 0 : i32
    %c0_i32_0 = arith.constant 0 : i32
    %c0_i32_1 = arith.constant 0 : i32
    return %c0_i32, %c0_i32_0 : i32, i32
  }
  func.func @transform_3(%arg0: i32) -> (i32, i32) {
    %c0_i32 = arith.constant 0 : i32
    %c0_i32_0 = arith.constant 0 : i32
    %c0_i32_1 = arith.constant 0 : i32
    return %c0_i32, %c0_i32_0 : i32, i32
  }
  func.func @transform_4(%arg0: i32) -> (i32, i32) {
    %c0_i32 = arith.constant 0 : i32
    %c0_i32_0 = arith.constant 0 : i32
    %c0_i32_1 = arith.constant 0 : i32
    return %c0_i32, %c0_i32_0 : i32, i32
  }
  func.func @transform_5(%arg0: i32) -> (i32, i32) {
    %c0_i32 = arith.constant 0 : i32
    %c0_i32_0 = arith.constant 0 : i32
    %c0_i32_1 = arith.constant 0 : i32
    return %c0_i32, %c0_i32_0 : i32, i32
  }
  func.func @transform_6(%arg0: i32) -> (i32, i32) {
    %c0_i32 = arith.constant 0 : i32
    %c0_i32_0 = arith.constant 0 : i32
    %c0_i32_1 = arith.constant 0 : i32
    return %c0_i32, %c0_i32_0 : i32, i32
  }
  func.func @transform_7(%arg0: i32) -> (i32, i32) {
    %c0_i32 = arith.constant 0 : i32
    %c0_i32_0 = arith.constant 0 : i32
    %c0_i32_1 = arith.constant 0 : i32
    return %c0_i32, %c0_i32_0 : i32, i32
  }
  func.func @transform_8(%arg0: i32) -> (i32, i32) {
    %c0_i32 = arith.constant 0 : i32
    %c0_i32_0 = arith.constant 0 : i32
    %c0_i32_1 = arith.constant 0 : i32
    return %c0_i32, %c0_i32_0 : i32, i32
  }
  func.func @transform_9(%arg0: i32) -> (i32, i32) {
    %c0_i32 = arith.constant 0 : i32
    %c0_i32_0 = arith.constant 0 : i32
    %c0_i32_1 = arith.constant 0 : i32
    return %c0_i32, %c0_i32_0 : i32, i32
  }
  func.func @transform_10(%arg0: i32) -> (i32, i32) {
    %c0_i32 = arith.constant 0 : i32
    %c0_i32_0 = arith.constant 0 : i32
    %c0_i32_1 = arith.constant 0 : i32
    return %c0_i32, %c0_i32_0 : i32, i32
  }
  func.func @transform_11(%arg0: i32) -> (i32, i32) {
    %c0_i32 = arith.constant 0 : i32
    %c0_i32_0 = arith.constant 0 : i32
    %c0_i32_1 = arith.constant 0 : i32
    return %c0_i32, %c0_i32_0 : i32, i32
  }
  func.func @transform_12(%arg0: i32) -> (i32, i32) {
    %c0_i32 = arith.constant 0 : i32
    %c0_i32_0 = arith.constant 0 : i32
    %c0_i32_1 = arith.constant 0 : i32
    return %c0_i32, %c0_i32_0 : i32, i32
  }
  func.func @transform_13(%arg0: i32) -> (i32, i32, i32) {
    %c0_i32 = arith.constant 0 : i32
    %c0_i32_0 = arith.constant 0 : i32
    %c0_i32_1 = arith.constant 0 : i32
    return %arg0, %c0_i32, %c0_i32_0 : i32, i32, i32
  }
}

</mosaic_0001>

<llo_original>
// kernel: tpu_custom_call.1
$region0: #{tpu_custom_call.1}
  #allocation0 [shape = 'u32[]', space=smem, size = 0x4, offset = 0x4, fixed_abs, tag = 'smem constant byte address 0x4 - core index']
  #allocation1 [shape = 'u32[72,128]{1,0:T(1,128)}', space=vmem, size = 0x9000, scoped, tag = 'internal scratch']
  %s0 = inlined_call_operand.hbm [shape: f32[2,8,32], index: 0, kind: input, shape index: {}]
  %s1 = inlined_call_operand.hbm [shape: f32[1,32], index: 1, kind: input, shape index: {}]
  %s2 = inlined_call_operand.vmem [shape: f32[1,32], index: 2, kind: input, shape index: {}]
  %s3 = inlined_call_operand.vmem [shape: f32[32,96], index: 3, kind: input, shape index: {}]
  %s4 = inlined_call_operand.vmem [shape: f32[1,96], index: 4, kind: input, shape index: {}]
  %s5 = inlined_call_operand.vmem [shape: f32[32,32], index: 5, kind: input, shape index: {}]
  %s6 = inlined_call_operand.vmem [shape: f32[1,32], index: 6, kind: input, shape index: {}]
  %s7 = inlined_call_operand.vmem [shape: f32[1,32], index: 7, kind: input, shape index: {}]
  %s8 = inlined_call_operand.vmem [shape: f32[1,32], index: 8, kind: input, shape index: {}]
  %s9 = inlined_call_operand.vmem [shape: f32[32,64], index: 9, kind: input, shape index: {}]
  %s10 = inlined_call_operand.vmem [shape: f32[1,64], index: 10, kind: input, shape index: {}]
  %s11 = inlined_call_operand.vmem [shape: f32[64,32], index: 11, kind: input, shape index: {}]
  %s12 = inlined_call_operand.vmem [shape: f32[1,32], index: 12, kind: input, shape index: {}]
  %s13 = inlined_call_operand.hbm [shape: f32[2,8,32], index: 13, kind: output, shape index: {}]
  %s14 = sld [smem:[#allocation0]]
  $region93: #{tpu_custom_call.1} parent=0
    _
  %s16 = ssub.s32 1, %s14
  %s17 = scalar_select 0, %s16, %s14
  $region1: #{tpu_custom_call.1} parent=0
    #allocation2 [shape = 'u8[8192]{0}', space=vmem, size = 0x2000, scoped, tag = 'input window, operand 0']
    #allocation3 [shape = 's32[2]{0}', space=sflag, size = 0x8, scoped, tag = 'scoped memory for tpu_custom_call.1']
    #allocation4 [shape = 's32[2]{0}', space=sflag, size = 0x8, scoped, tag = 'scoped memory for tpu_custom_call.1']
    #allocation5 [shape = 'u8[512]{0}', space=vmem, size = 0x400, scoped, tag = 'input window, operand 1, single buffered']
    #allocation6 [shape = 's32[1]{0}', space=sflag, size = 0x4, scoped, tag = 'scoped memory for tpu_custom_call.1']
    #allocation7 [shape = 'u8[8192]{0}', space=vmem, size = 0x2000, scoped, tag = 'output window, operand 0']
    %18 = vsyncpa [#allocation3], 0
    %s19 = scalar_lea.sflag [#allocation3], 1
    %20 = vsyncpa %s19, 0
    %21 = vsyncpa [#allocation6], 0
    %22 = vsyncpa [#allocation4], 0
    %s23 = scalar_lea.sflag [#allocation4], 1
    %24 = vsyncpa %s23, 0
    loop: start=0, step=1, limit=4
    $region2: #{tpu_custom_call.1} parent=1 // loop_pre_header
      _
    $region3: #{tpu_custom_call.1} parent=1 // loop_header
      %s26 = sphi 0, %s30
      %p27 = scmp.ge.s32.totalorder %s26, 4
      %s36 = sphi 0, %s38
      %s39 = sphi 0, %s36
      %s40 = sphi 0, %s39
      %s56 = sphi 0, %s40
      %s60 = sphi 0, %s60
      %s62 = sphi 0, %s60
      %s63 = sphi 0, %s62
      %s77 = sphi 0, %s63
      %s81 = sphi 0, %s81
      %s83 = sphi 0, %s81
      %s84 = sphi 0, %s83
      %s98 = sphi 0, %s84
      %s102 = sphi 0, %s102
      %s104 = sphi 0, %s102
      %s105 = sphi 0, %s104
      %s119 = sphi 0, %s105
      %s123 = sphi 0, %s123
      %s125 = sphi 0, %s123
      %s126 = sphi 0, %s125
      %s140 = sphi 0, %s126
      %s144 = sphi 0, %s144
      %s146 = sphi 0, %s144
      %s147 = sphi 0, %s146
      %s161 = sphi 0, %s147
      %s165 = sphi 0, %s165
      %s167 = sphi 0, %s165
      %s168 = sphi 0, %s167
      %s182 = sphi 0, %s168
      %s186 = sphi 0, %s186
      %s188 = sphi 0, %s186
      %s189 = sphi 0, %s188
      %s203 = sphi 0, %s189
      %s207 = sphi 0, %s207
      %s209 = sphi 0, %s207
      %s210 = sphi 0, %s209
      %s224 = sphi 0, %s210
      %s228 = sphi 0, %s228
      %s230 = sphi 0, %s228
      %s231 = sphi 0, %s230
      %s245 = sphi 0, %s231
      %s249 = sphi 0, %s249
      %s251 = sphi 0, %s249
      %s252 = sphi 0, %s251
      %s266 = sphi 0, %s252
      %s270 = sphi 0, %s270
      %s272 = sphi 0, %s270
      %s273 = sphi 0, %s272
      %s287 = sphi 0, %s273
      %s291 = sphi 0, %s291
      %s293 = sphi 0, %s291
      %s294 = sphi 0, %s293
      %s308 = sphi 0, %s294
      %s314 = sphi 0, %s316
      %s317 = sphi 0, %s314
      %s318 = sphi 0, %s317
      %s334 = sphi 0, %s318
    $region4: #{tpu_custom_call.1} parent=1 // loop_header_branch
      %29 = sbr.rel (%p27) target = $region8
    $region5: #{tpu_custom_call.1} parent=1 // loop_body
      %s31 = ssub.s32 %s26, 1
      %s32 = ssub.s32 %s26, 2
      %s33 = sadd.s32 %s26, 1
      %s34 = ssub.s32 %s26, %s33
      %p35 = scmp.eq.s32.totalorder %s34, 0
      %s37 = sadd.s32 %s36, 1
      %s38 = scalar_select %p35, %s36, %s37
      %p41 = pneg %p35
      %p42 = scmp.eq.s32.totalorder %s26, 1
      %p43 = por %p41, %p42
      %p44 = scmp.ne.s32.totalorder %s36, %s39
      %p45 = scmp.eq.s32.totalorder %s26, 0
      %p46 = por %p44, %p45
      %p47 = scmp.ne.s32.totalorder %s36, %s39
      %p48 = scmp.eq.s32.totalorder %s31, 1
      %p49 = por %p47, %p48
      %p50 = scmp.ne.s32.totalorder %s39, %s40
      %p51 = scmp.eq.s32.totalorder %s31, 0
      %p52 = por %p50, %p51
      %p53 = scmp.ne.s32.totalorder %s39, %s40
      %p54 = scmp.eq.s32.totalorder %s32, 1
      %p55 = por %p53, %p54
      %p57 = scmp.ne.s32.totalorder %s40, %s56
      %p58 = scmp.eq.s32.totalorder %s32, 0
      %p59 = por %p57, %p58
      %s61 = sadd.s32 %s60, 1
      %p64 = scmp.eq.s32.totalorder %s26, 1
      %p65 = scmp.ne.s32.totalorder %s60, %s62
      %p66 = scmp.eq.s32.totalorder %s26, 0
      %p67 = por %p65, %p66
      %p68 = scmp.ne.s32.totalorder %s60, %s62
      %p69 = scmp.eq.s32.totalorder %s31, 1
      %p70 = por %p68, %p69
      %p71 = scmp.ne.s32.totalorder %s62, %s63
      %p72 = scmp.eq.s32.totalorder %s31, 0
      %p73 = por %p71, %p72
      %p74 = scmp.ne.s32.totalorder %s62, %s63
      %p75 = scmp.eq.s32.totalorder %s32, 1
      %p76 = por %p74, %p75
      %p78 = scmp.ne.s32.totalorder %s63, %s77
      %p79 = scmp.eq.s32.totalorder %s32, 0
      %p80 = por %p78, %p79
      %s82 = sadd.s32 %s81, 1
      %p85 = scmp.eq.s32.totalorder %s26, 1
      %p86 = scmp.ne.s32.totalorder %s81, %s83
      %p87 = scmp.eq.s32.totalorder %s26, 0
      %p88 = por %p86, %p87
      %p89 = scmp.ne.s32.totalorder %s81, %s83
      %p90 = scmp.eq.s32.totalorder %s31, 1
      %p91 = por %p89, %p90
      %p92 = scmp.ne.s32.totalorder %s83, %s84
      %p93 = scmp.eq.s32.totalorder %s31, 0
      %p94 = por %p92, %p93
      %p95 = scmp.ne.s32.totalorder %s83, %s84
      %p96 = scmp.eq.s32.totalorder %s32, 1
      %p97 = por %p95, %p96
      %p99 = scmp.ne.s32.totalorder %s84, %s98
      %p100 = scmp.eq.s32.totalorder %s32, 0
      %p101 = por %p99, %p100
      %s103 = sadd.s32 %s102, 1
      %p106 = scmp.eq.s32.totalorder %s26, 1
      %p107 = scmp.ne.s32.totalorder %s102, %s104
      %p108 = scmp.eq.s32.totalorder %s26, 0
      %p109 = por %p107, %p108
      %p110 = scmp.ne.s32.totalorder %s102, %s104
      %p111 = scmp.eq.s32.totalorder %s31, 1
      %p112 = por %p110, %p111
      %p113 = scmp.ne.s32.totalorder %s104, %s105
      %p114 = scmp.eq.s32.totalorder %s31, 0
      %p115 = por %p113, %p114
      %p116 = scmp.ne.s32.totalorder %s104, %s105
      %p117 = scmp.eq.s32.totalorder %s32, 1
      %p118 = por %p116, %p117
      %p120 = scmp.ne.s32.totalorder %s105, %s119
      %p121 = scmp.eq.s32.totalorder %s32, 0
      %p122 = por %p120, %p121
      %s124 = sadd.s32 %s123, 1
      %p127 = scmp.eq.s32.totalorder %s26, 1
      %p128 = scmp.ne.s32.totalorder %s123, %s125
      %p129 = scmp.eq.s32.totalorder %s26, 0
      %p130 = por %p128, %p129
      %p131 = scmp.ne.s32.totalorder %s123, %s125
      %p132 = scmp.eq.s32.totalorder %s31, 1
      %p133 = por %p131, %p132
      %p134 = scmp.ne.s32.totalorder %s125, %s126
      %p135 = scmp.eq.s32.totalorder %s31, 0
      %p136 = por %p134, %p135
      %p137 = scmp.ne.s32.totalorder %s125, %s126
      %p138 = scmp.eq.s32.totalorder %s32, 1
      %p139 = por %p137, %p138
      %p141 = scmp.ne.s32.totalorder %s126, %s140
      %p142 = scmp.eq.s32.totalorder %s32, 0
      %p143 = por %p141, %p142
      %s145 = sadd.s32 %s144, 1
      %p148 = scmp.eq.s32.totalorder %s26, 1
      %p149 = scmp.ne.s32.totalorder %s144, %s146
      %p150 = scmp.eq.s32.totalorder %s26, 0
      %p151 = por %p149, %p150
      %p152 = scmp.ne.s32.totalorder %s144, %s146
      %p153 = scmp.eq.s32.totalorder %s31, 1
      %p154 = por %p152, %p153
      %p155 = scmp.ne.s32.totalorder %s146, %s147
      %p156 = scmp.eq.s32.totalorder %s31, 0
      %p157 = por %p155, %p156
      %p158 = scmp.ne.s32.totalorder %s146, %s147
      %p159 = scmp.eq.s32.totalorder %s32, 1
      %p160 = por %p158, %p159
      %p162 = scmp.ne.s32.totalorder %s147, %s161
      %p163 = scmp.eq.s32.totalorder %s32, 0
      %p164 = por %p162, %p163
      %s166 = sadd.s32 %s165, 1
      %p169 = scmp.eq.s32.totalorder %s26, 1
      %p170 = scmp.ne.s32.totalorder %s165, %s167
      %p171 = scmp.eq.s32.totalorder %s26, 0
      %p172 = por %p170, %p171
      %p173 = scmp.ne.s32.totalorder %s165, %s167
      %p174 = scmp.eq.s32.totalorder %s31, 1
      %p175 = por %p173, %p174
      %p176 = scmp.ne.s32.totalorder %s167, %s168
      %p177 = scmp.eq.s32.totalorder %s31, 0
      %p178 = por %p176, %p177
      %p179 = scmp.ne.s32.totalorder %s167, %s168
      %p180 = scmp.eq.s32.totalorder %s32, 1
      %p181 = por %p179, %p180
      %p183 = scmp.ne.s32.totalorder %s168, %s182
      %p184 = scmp.eq.s32.totalorder %s32, 0
      %p185 = por %p183, %p184
      %s187 = sadd.s32 %s186, 1
      %p190 = scmp.eq.s32.totalorder %s26, 1
      %p191 = scmp.ne.s32.totalorder %s186, %s188
      %p192 = scmp.eq.s32.totalorder %s26, 0
      %p193 = por %p191, %p192
      %p194 = scmp.ne.s32.totalorder %s186, %s188
      %p195 = scmp.eq.s32.totalorder %s31, 1
      %p196 = por %p194, %p195
      %p197 = scmp.ne.s32.totalorder %s188, %s189
      %p198 = scmp.eq.s32.totalorder %s31, 0
      %p199 = por %p197, %p198
      %p200 = scmp.ne.s32.totalorder %s188, %s189
      %p201 = scmp.eq.s32.totalorder %s32, 1
      %p202 = por %p200, %p201
      %p204 = scmp.ne.s32.totalorder %s189, %s203
      %p205 = scmp.eq.s32.totalorder %s32, 0
      %p206 = por %p204, %p205
      %s208 = sadd.s32 %s207, 1
      %p211 = scmp.eq.s32.totalorder %s26, 1
      %p212 = scmp.ne.s32.totalorder %s207, %s209
      %p213 = scmp.eq.s32.totalorder %s26, 0
      %p214 = por %p212, %p213
      %p215 = scmp.ne.s32.totalorder %s207, %s209
      %p216 = scmp.eq.s32.totalorder %s31, 1
      %p217 = por %p215, %p216
      %p218 = scmp.ne.s32.totalorder %s209, %s210
      %p219 = scmp.eq.s32.totalorder %s31, 0
      %p220 = por %p218, %p219
      %p221 = scmp.ne.s32.totalorder %s209, %s210
      %p222 = scmp.eq.s32.totalorder %s32, 1
      %p223 = por %p221, %p222
      %p225 = scmp.ne.s32.totalorder %s210, %s224
      %p226 = scmp.eq.s32.totalorder %s32, 0
      %p227 = por %p225, %p226
      %s229 = sadd.s32 %s228, 1
      %p232 = scmp.eq.s32.totalorder %s26, 1
      %p233 = scmp.ne.s32.totalorder %s228, %s230
      %p234 = scmp.eq.s32.totalorder %s26, 0
      %p235 = por %p233, %p234
      %p236 = scmp.ne.s32.totalorder %s228, %s230
      %p237 = scmp.eq.s32.totalorder %s31, 1
      %p238 = por %p236, %p237
      %p239 = scmp.ne.s32.totalorder %s230, %s231
      %p240 = scmp.eq.s32.totalorder %s31, 0
      %p241 = por %p239, %p240
      %p242 = scmp.ne.s32.totalorder %s230, %s231
      %p243 = scmp.eq.s32.totalorder %s32, 1
      %p244 = por %p242, %p243
      %p246 = scmp.ne.s32.totalorder %s231, %s245
      %p247 = scmp.eq.s32.totalorder %s32, 0
      %p248 = por %p246, %p247
      %s250 = sadd.s32 %s249, 1
      %p253 = scmp.eq.s32.totalorder %s26, 1
      %p254 = scmp.ne.s32.totalorder %s249, %s251
      %p255 = scmp.eq.s32.totalorder %s26, 0
      %p256 = por %p254, %p255
      %p257 = scmp.ne.s32.totalorder %s249, %s251
      %p258 = scmp.eq.s32.totalorder %s31, 1
      %p259 = por %p257, %p258
      %p260 = scmp.ne.s32.totalorder %s251, %s252
      %p261 = scmp.eq.s32.totalorder %s31, 0
      %p262 = por %p260, %p261
      %p263 = scmp.ne.s32.totalorder %s251, %s252
      %p264 = scmp.eq.s32.totalorder %s32, 1
      %p265 = por %p263, %p264
      %p267 = scmp.ne.s32.totalorder %s252, %s266
      %p268 = scmp.eq.s32.totalorder %s32, 0
      %p269 = por %p267, %p268
      %s271 = sadd.s32 %s270, 1
      %p274 = scmp.eq.s32.totalorder %s26, 1
      %p275 = scmp.ne.s32.totalorder %s270, %s272
      %p276 = scmp.eq.s32.totalorder %s26, 0
      %p277 = por %p275, %p276
      %p278 = scmp.ne.s32.totalorder %s270, %s272
      %p279 = scmp.eq.s32.totalorder %s31, 1
      %p280 = por %p278, %p279
      %p281 = scmp.ne.s32.totalorder %s272, %s273
      %p282 = scmp.eq.s32.totalorder %s31, 0
      %p283 = por %p281, %p282
      %p284 = scmp.ne.s32.totalorder %s272, %s273
      %p285 = scmp.eq.s32.totalorder %s32, 1
      %p286 = por %p284, %p285
      %p288 = scmp.ne.s32.totalorder %s273, %s287
      %p289 = scmp.eq.s32.totalorder %s32, 0
      %p290 = por %p288, %p289
      %s292 = sadd.s32 %s291, 1
      %p295 = scmp.eq.s32.totalorder %s26, 1
      %p296 = scmp.ne.s32.totalorder %s291, %s293
      %p297 = scmp.eq.s32.totalorder %s26, 0
      %p298 = por %p296, %p297
      %p299 = scmp.ne.s32.totalorder %s291, %s293
      %p300 = scmp.eq.s32.totalorder %s31, 1
      %p301 = por %p299, %p300
      %p302 = scmp.ne.s32.totalorder %s293, %s294
      %p303 = scmp.eq.s32.totalorder %s31, 0
      %p304 = por %p302, %p303
      %p305 = scmp.ne.s32.totalorder %s293, %s294
      %p306 = scmp.eq.s32.totalorder %s32, 1
      %p307 = por %p305, %p306
      %p309 = scmp.ne.s32.totalorder %s294, %s308
      %p310 = scmp.eq.s32.totalorder %s32, 0
      %p311 = por %p309, %p310
      %s312 = ssub.s32 %s26, %s33
      %p313 = scmp.eq.s32.totalorder %s312, 0
      %s315 = sadd.s32 %s314, 1
      %s316 = scalar_select %p313, %s314, %s315
      %p319 = pneg %p313
      %p320 = scmp.eq.s32.totalorder %s26, 1
      %p321 = por %p319, %p320
      %p322 = scmp.ne.s32.totalorder %s314, %s317
      %p323 = scmp.eq.s32.totalorder %s26, 0
      %p324 = por %p322, %p323
      %p325 = scmp.ne.s32.totalorder %s314, %s317
      %p326 = scmp.eq.s32.totalorder %s31, 1
      %p327 = por %p325, %p326
      %p328 = scmp.ne.s32.totalorder %s317, %s318
      %p329 = scmp.eq.s32.totalorder %s31, 0
      %p330 = por %p328, %p329
      %p331 = scmp.ne.s32.totalorder %s317, %s318
      %p332 = scmp.eq.s32.totalorder %s32, 1
      %p333 = por %p331, %p332
      %p335 = scmp.ne.s32.totalorder %s318, %s334
      %p336 = scmp.eq.s32.totalorder %s32, 0
      %p337 = por %p335, %p336
      %p338 = scmp.le.s32.totalorder 1, %s26
      %p339 = scmp.lt.s32.totalorder %s26, 3
      %p340 = pnand %p338, %p339
      %p341 = pneg %p340
      // Predicated region
      $region9: #{tpu_custom_call.1} parent=5 // pred_check
        _
      $region10: #{tpu_custom_call.1} parent=5 // pred_check_branch
        %343 = sbr.rel (%p340) target = $region12
      $region11: #{tpu_custom_call.1} parent=5 // pred_region
        %s344 = ssub.s32 %s26, 1
        // Predicated region
        $region13: #{tpu_custom_call.1} parent=11 // pred_check
          %p345 = pneg %p73
        $region14: #{tpu_custom_call.1} parent=11 // pred_check_branch
          %347 = sbr.rel (%p345) target = $region16
        $region15: #{tpu_custom_call.1} parent=11 // pred_region
          %349 = vsyncadd [#allocation6], 0
          %s351 = sshll.u32 %s1, 4
          %s352 = int_to_ptr.hbm [resolvable:$true] %s351
          %s353 = sshll.u32 [#allocation5], 4
          %s354 = int_to_ptr.vmem [resolvable:$true] %s353
          %356 = dma.hbm_to_vmem [thread:$0]  %s352, 16, %s354, [#allocation6]
        $region16: #{tpu_custom_call.1} parent=11 // pred_fallthru
          _
        // Predicated region
        $region17: #{tpu_custom_call.1} parent=11 // pred_check
          %p357 = pneg %p94
        $region18: #{tpu_custom_call.1} parent=11 // pred_check_branch
          %359 = sbr.rel (%p357) target = $region20
        $region19: #{tpu_custom_call.1} parent=11 // pred_region
          _
        $region20: #{tpu_custom_call.1} parent=11 // pred_fallthru
          _
        // Predicated region
        $region21: #{tpu_custom_call.1} parent=11 // pred_check
          %p360 = pneg %p115
        $region22: #{tpu_custom_call.1} parent=11 // pred_check_branch
          %362 = sbr.rel (%p360) target = $region24
        $region23: #{tpu_custom_call.1} parent=11 // pred_region
          _
        $region24: #{tpu_custom_call.1} parent=11 // pred_fallthru
          _
        // Predicated region
        $region25: #{tpu_custom_call.1} parent=11 // pred_check
          %p363 = pneg %p136
        $region26: #{tpu_custom_call.1} parent=11 // pred_check_branch
          %365 = sbr.rel (%p363) target = $region28
        $region27: #{tpu_custom_call.1} parent=11 // pred_region
          _
        $region28: #{tpu_custom_call.1} parent=11 // pred_fallthru
          _
        // Predicated region
        $region29: #{tpu_custom_call.1} parent=11 // pred_check
          %p366 = pneg %p157
        $region30: #{tpu_custom_call.1} parent=11 // pred_check_branch
          %368 = sbr.rel (%p366) target = $region32
        $region31: #{tpu_custom_call.1} parent=11 // pred_region
          _
        $region32: #{tpu_custom_call.1} parent=11 // pred_fallthru
          _
        // Predicated region
        $region33: #{tpu_custom_call.1} parent=11 // pred_check
          %p369 = pneg %p178
        $region34: #{tpu_custom_call.1} parent=11 // pred_check_branch
          %371 = sbr.rel (%p369) target = $region36
        $region35: #{tpu_custom_call.1} parent=11 // pred_region
          _
        $region36: #{tpu_custom_call.1} parent=11 // pred_fallthru
          _
        // Predicated region
        $region37: #{tpu_custom_call.1} parent=11 // pred_check
          %p372 = pneg %p199
        $region38: #{tpu_custom_call.1} parent=11 // pred_check_branch
          %374 = sbr.rel (%p372) target = $region40
        $region39: #{tpu_custom_call.1} parent=11 // pred_region
          _
        $region40: #{tpu_custom_call.1} parent=11 // pred_fallthru
          _
        // Predicated region
        $region41: #{tpu_custom_call.1} parent=11 // pred_check
          %p375 = pneg %p220
        $region42: #{tpu_custom_call.1} parent=11 // pred_check_branch
          %377 = sbr.rel (%p375) target = $region44
        $region43: #{tpu_custom_call.1} parent=11 // pred_region
          _
        $region44: #{tpu_custom_call.1} parent=11 // pred_fallthru
          _
        // Predicated region
        $region45: #{tpu_custom_call.1} parent=11 // pred_check
          %p378 = pneg %p241
        $region46: #{tpu_custom_call.1} parent=11 // pred_check_branch
          %380 = sbr.rel (%p378) target = $region48
        $region47: #{tpu_custom_call.1} parent=11 // pred_region
          _
        $region48: #{tpu_custom_call.1} parent=11 // pred_fallthru
          _
        // Predicated region
        $region49: #{tpu_custom_call.1} parent=11 // pred_check
          %p381 = pneg %p262
        $region50: #{tpu_custom_call.1} parent=11 // pred_check_branch
          %383 = sbr.rel (%p381) target = $region52
        $region51: #{tpu_custom_call.1} parent=11 // pred_region
          _
        $region52: #{tpu_custom_call.1} parent=11 // pred_fallthru
          _
        // Predicated region
        $region53: #{tpu_custom_call.1} parent=11 // pred_check
          %p384 = pneg %p283
        $region54: #{tpu_custom_call.1} parent=11 // pred_check_branch
          %386 = sbr.rel (%p384) target = $region56
        $region55: #{tpu_custom_call.1} parent=11 // pred_region
          _
        $region56: #{tpu_custom_call.1} parent=11 // pred_fallthru
          _
        // Predicated region
        $region57: #{tpu_custom_call.1} parent=11 // pred_check
          %p387 = pneg %p304
        $region58: #{tpu_custom_call.1} parent=11 // pred_check_branch
          %389 = sbr.rel (%p387) target = $region60
        $region59: #{tpu_custom_call.1} parent=11 // pred_region
          _
        $region60: #{tpu_custom_call.1} parent=11 // pred_fallthru
          _
      $region12: #{tpu_custom_call.1} parent=5 // pred_fallthru
        _
      %p390 = scmp.lt.s32.totalorder %s26, 2
      // Predicated region
      $region61: #{tpu_custom_call.1} parent=5 // pred_check
        %p391 = pneg %p390
      $region62: #{tpu_custom_call.1} parent=5 // pred_check_branch
        %393 = sbr.rel (%p391) target = $region64
      $region63: #{tpu_custom_call.1} parent=5 // pred_region
        // Predicated region
        $region65: #{tpu_custom_call.1} parent=63 // pred_check
          %p394 = pneg %p46
        $region66: #{tpu_custom_call.1} parent=63 // pred_check_branch
          %396 = sbr.rel (%p394) target = $region68
        $region67: #{tpu_custom_call.1} parent=63 // pred_region
          %s397 = sand.u32 %s36, 1
          %s398 = scalar_lea.sflag [#allocation3], %s397
          %s399 = sand.u32 %s36, 1
          %s400 = smul.addr %s399, 8
          %s401 = scalar_lea.vmem [#allocation2], %s400
          %403 = vsyncadd %s398, 0
          %s404 = smul.addr %s26, 8
          %s405 = scalar_lea.hbm %s0, %s404
          %s407 = sshll.u32 %s405, 4
          %s408 = int_to_ptr.hbm [resolvable:$true] %s407
          %s409 = sshll.u32 %s401, 4
          %s410 = int_to_ptr.vmem [resolvable:$true] %s409
          %412 = dma.hbm_to_vmem [thread:$0]  %s408, 128, %s410, %s398
        $region68: #{tpu_custom_call.1} parent=63 // pred_fallthru
          _
      $region64: #{tpu_custom_call.1} parent=5 // pred_fallthru
        _
      %p413 = scmp.le.s32.totalorder 1, %s26
      %p414 = scmp.lt.s32.totalorder %s26, 3
      %p415 = pnand %p413, %p414
      %p416 = pneg %p415
      // Predicated region
      $region69: #{tpu_custom_call.1} parent=5 // pred_check
        _
      $region70: #{tpu_custom_call.1} parent=5 // pred_check_branch
        %418 = sbr.rel (%p415) target = $region72
      $region71: #{tpu_custom_call.1} parent=5 // pred_region
        %s419 = ssub.s32 %s26, 1
        %s420 = sand.u32 %s39, 1
        %s421 = scalar_lea.sflag [#allocation3], %s420
        %s422 = sand.u32 %s39, 1
        %s423 = smul.addr %s422, 8
        %s424 = scalar_lea.vmem [#allocation2], %s423
        // Predicated region
        $region73: #{tpu_custom_call.1} parent=71 // pred_check
          %p425 = pneg %p52
        $region74: #{tpu_custom_call.1} parent=71 // pred_check_branch
          %427 = sbr.rel (%p425) target = $region76
        $region75: #{tpu_custom_call.1} parent=71 // pred_region
          %429 = dma.done %s421, 128
        $region76: #{tpu_custom_call.1} parent=71 // pred_fallthru
          _
        // Predicated region
        $region77: #{tpu_custom_call.1} parent=71 // pred_check
          %p430 = pneg %p73
        $region78: #{tpu_custom_call.1} parent=71 // pred_check_branch
          %432 = sbr.rel (%p430) target = $region80
        $region79: #{tpu_custom_call.1} parent=71 // pred_region
          %434 = dma.done [#allocation6], 16
        $region80: #{tpu_custom_call.1} parent=71 // pred_fallthru
          _
        %s435 = sand.u32 %s39, 1
        %s436 = scalar_lea.sflag [#allocation3], %s435
        %s437 = sand.u32 %s39, 1
        %s438 = smul.addr %s437, 8
        %s439 = scalar_lea.vmem [#allocation2], %s438
        %p440 = pneg %p52
        %p441 = pneg %p49
        %p442 = pneg %p73
        %p443 = pneg %p70
        %p444 = pneg %p94
        %p445 = pneg %p91
        %p446 = pneg %p115
        %p447 = pneg %p112
        %p448 = pneg %p136
        %p449 = pneg %p133
        %p450 = pneg %p157
        %p451 = pneg %p154
        %p452 = pneg %p178
        %p453 = pneg %p175
        %p454 = pneg %p199
        %p455 = pneg %p196
        %p456 = pneg %p220
        %p457 = pneg %p217
        %p458 = pneg %p241
        %p459 = pneg %p238
        %p460 = pneg %p262
        %p461 = pneg %p259
        %p462 = pneg %p283
        %p463 = pneg %p280
        %p464 = pneg %p304
        %p465 = pneg %p301
        %p466 = pneg %p330
        %p467 = pneg %p327
        %s468 = sand.u32 %s317, 1
        %s469 = scalar_lea.sflag [#allocation4], %s468
        %s470 = sand.u32 %s317, 1
        %s471 = smul.addr %s470, 8
        %s472 = scalar_lea.vmem [#allocation7], %s471
        %v473 = vld [vmem:[%s424] sm:$0xff]
        %vm474 = vcmask 261120
        %v475 = vsel %vm474, %v473, 0.0
        %476 = vadd.xlane.f32.xlu0 %v475
        %v477 = vpop.xlane.xlu0 %476
        %v478 = vrcp.pop 32.0
        %v479 = vmul.f32 32.0, %v478
        %v480 = vsub.f32 1.0, %v479
        %v481 = vmul.f32 %v478, %v480
        %v482 = vadd.f32 %v478, %v481
        %vm483 = vweird.f32 %v478
        %v484 = vsel %vm483, %v478, %v482
        %v485 = vmul.f32 %v477, %v484
        %v486 = vsub.f32 %v473, %v485
        %v487 = vmul.f32 %v486, %v486
        %v488 = vsel %vm474, %v487, 0.0
        %489 = vadd.xlane.f32.xlu0 %v488
        %v490 = vpop.xlane.xlu0 %489
        %v491 = vmul.f32 %v490, %v484
        %v492 = vadd.f32 %v491, 1e-05
        %v493 = vrsqrt.pop %v492
        %v494 = vmul.f32 %v493, %v492
        %v495 = vmul.f32 %v494, %v493
        %v496 = vmul.f32 0.5, %v495
        %v497 = vsub.f32 1.5, %v496
        %v498 = vmul.f32 %v493, %v497
        %vm499 = vweird.f32 %v492
        %vm500 = vweird.f32 %v493
        %vm501 = vmor %vm499, %vm500
        %v502 = vsel %vm501, %v493, %v498
        %v503 = vmul.f32 %v486, %v502
        %v504 = vld [vmem:[#allocation5] sm:$0x1]
        %v506 = vperm.slane %v504, 0
        %v508 = vmul.f32 %v503, %v506
        %v509 = vld [vmem:[%s2] sm:$0x1]
        %v511 = vperm.slane %v509, 0
        %v513 = vadd.f32 %v508, %v511
        %v514 = vld [vmem:[%s3] sm:$0xff]
        %v515 = vld [vmem:[%s3 + $0x8] sm:$0xff]
        %v516 = vld [vmem:[%s3 + $0x10] sm:$0xff]
        %v517 = vld [vmem:[%s3 + $0x18] sm:$0xff]
        %v518 = vld [vmem:[%s4] sm:$0x1]
        %v520 = vperm.slane %v518, 0
        %v523 = vsel %vm474, %v513, 0
        %525 = vmatpush.msra.mxu0 0.0
        %526 = vmatpush.msra.mxu0 0.0
        %527 = vmatpush.msra.mxu0 0.0
        %528 = vmatpush.msra.mxu0 0.0
        %529 = vmatpush.msra.mxu0 0.0
        %530 = vmatpush.msra.mxu0 0.0
        %531 = vmatpush.msra.mxu0 0.0
        %532 = vmatpush.msra.mxu0 0.0
        %533 = vmatpush.msra.mxu0 0.0
        %534 = vmatpush.msra.mxu0 0.0
        %535 = vmatpush.msra.mxu0 0.0
        %536 = vmatpush.msra.mxu0 0.0
        %537 = vmatpush.msra.mxu0 %v517
        %538 = vmatpush.msra.mxu0 %v516
        %539 = vmatpush.msra.mxu0 %v515
        %540 = vmatpush.msra.mxu0 %v514
        %541 = vmatmul.f32.gmra.mxu0 %v523
        %v542 = vpop.f32.mrf.mxu0
        %v543 = vadd.f32 %v520, %v542
        %544 = vdwg.mxu0
        %v545 = vmul.f32 %v543, 0.35355338
        %547 = vrot.lane.b32.xlu0 %v543, 96
        %v548 = vpop.permute.xlu0 %547
        %vm549 = vcmask 64512
        %v551 = vsel %vm549, %v545, 0
        %v553 = vsel %vm549, %v548, 0
        %555 = vmatpush.xpose.msra.mxu0 0.0
        %556 = vmatpush.xpose.msra.mxu0 0.0
        %557 = vmatpush.xpose.msra.mxu0 0.0
        %558 = vmatpush.xpose.msra.mxu0 0.0
        %559 = vmatpush.xpose.msra.mxu0 0.0
        %560 = vmatpush.xpose.msra.mxu0 0.0
        %561 = vmatpush.xpose.msra.mxu0 0.0
        %562 = vmatpush.xpose.msra.mxu0 0.0
        %563 = vmatpush.xpose.msra.mxu0 0.0
        %564 = vmatpush.xpose.msra.mxu0 0.0
        %565 = vmatpush.xpose.msra.mxu0 0.0
        %566 = vmatpush.xpose.msra.mxu0 0.0
        %567 = vmatpush.xpose.msra.mxu0 0.0
        %568 = vmatpush.xpose.msra.mxu0 0.0
        %569 = vmatpush.xpose.msra.mxu0 0.0
        %570 = vmatpush.xpose.msra.mxu0 %v553
        %571 = vmatmul.f32.gmra.mxu0 %v551
        %v572 = vpop.f32.mrf.mxu0
        %v573 = vadd.f32 0.0, %v572
        %574 = vdwg.mxu0
        %v575 = vsel %vm549, %v573, -inf
        %576 = vmax.xlane.f32.xlu0 %v575
        %v577 = vpop.xlane.xlu0 %576
        %v578 = vsub.f32 %v573, %v577
        %v579 = vmul.f32 %v578, 1.442695
        %v580 = vpow.pop %v579
        %v581 = vsel %vm549, %v580, 0.0
        %582 = vadd.xlane.f32.xlu0 %v581
        %v583 = vpop.xlane.xlu0 %582
        %v584 = vrcp.pop %v583
        %v585 = vmul.f32 %v583, %v584
        %v586 = vsub.f32 1.0, %v585
        %v587 = vmul.f32 %v584, %v586
        %v588 = vadd.f32 %v584, %v587
        %vm589 = vweird.f32 %v583
        %vm590 = vweird.f32 %v584
        %vm591 = vmor %vm589, %vm590
        %v592 = vsel %vm591, %v584, %v588
        %v593 = vand.u32 2147483647, %v583
        %vm594 = vcmp.eq.f32.partialorder %v593, 8.507059e+37
        %v595 = vand.u32 %v583, 2147483648
        %v596 = vor.u32 1.1754944e-38, %v595
        %v597 = vsel %vm594, %v596, %v592
        %v598 = vmul.f32 %v580, %v597
        %599 = vrot.lane.b32.xlu0 %v543, 64
        %v600 = vpop.permute.xlu0 %599
        %v603 = vsel %vm549, %v598, 0
        %605 = vmatpush.msra.mxu0 0.0
        %606 = vmatpush.msra.mxu0 0.0
        %607 = vmatpush.msra.mxu0 0.0
        %608 = vmatpush.msra.mxu0 0.0
        %609 = vmatpush.msra.mxu0 0.0
        %610 = vmatpush.msra.mxu0 0.0
        %611 = vmatpush.msra.mxu0 0.0
        %612 = vmatpush.msra.mxu0 0.0
        %613 = vmatpush.msra.mxu0 0.0
        %614 = vmatpush.msra.mxu0 0.0
        %615 = vmatpush.msra.mxu0 0.0
        %616 = vmatpush.msra.mxu0 0.0
        %617 = vmatpush.msra.mxu0 0.0
        %618 = vmatpush.msra.mxu0 0.0
        %619 = vmatpush.msra.mxu0 0.0
        %620 = vmatpush.msra.mxu0 %v600
        %621 = vmatmul.f32.gmra.mxu0 %v603
        %v622 = vpop.f32.mrf.mxu0
        %v623 = vadd.f32 0.0, %v622
        %624 = vdwg.mxu0
        %v625 = vld [vmem:[%s5] sm:$0xff]
        %626 = vrot.lane.b32.xlu0 %v545, 120
        %v627 = vpop.permute.xlu0 %626
        %628 = vrot.lane.b32.xlu0 %v543, 88
        %v629 = vpop.permute.xlu0 %628
        %v630 = vsel %vm549, %v627, 0
        %v632 = vsel %vm549, %v629, 0
        %634 = vmatpush.xpose.msra.mxu0 0.0
        %635 = vmatpush.xpose.msra.mxu0 0.0
        %636 = vmatpush.xpose.msra.mxu0 0.0
        %637 = vmatpush.xpose.msra.mxu0 0.0
        %638 = vmatpush.xpose.msra.mxu0 0.0
        %639 = vmatpush.xpose.msra.mxu0 0.0
        %640 = vmatpush.xpose.msra.mxu0 0.0
        %641 = vmatpush.xpose.msra.mxu0 0.0
        %642 = vmatpush.xpose.msra.mxu0 0.0
        %643 = vmatpush.xpose.msra.mxu0 0.0
        %644 = vmatpush.xpose.msra.mxu0 0.0
        %645 = vmatpush.xpose.msra.mxu0 0.0
        %646 = vmatpush.xpose.msra.mxu0 0.0
        %647 = vmatpush.xpose.msra.mxu0 0.0
        %648 = vmatpush.xpose.msra.mxu0 0.0
        %649 = vmatpush.xpose.msra.mxu0 %v632
        %650 = vmatmul.f32.gmra.mxu0 %v630
        %v651 = vpop.f32.mrf.mxu0
        %v652 = vadd.f32 0.0, %v651
        %653 = vdwg.mxu0
        %v654 = vsel %vm549, %v652, -inf
        %655 = vmax.xlane.f32.xlu0 %v654
        %v656 = vpop.xlane.xlu0 %655
        %v657 = vsub.f32 %v652, %v656
        %v658 = vmul.f32 %v657, 1.442695
        %v659 = vpow.pop %v658
        %v660 = vsel %vm549, %v659, 0.0
        %661 = vadd.xlane.f32.xlu0 %v660
        %v662 = vpop.xlane.xlu0 %661
        %v663 = vrcp.pop %v662
        %v664 = vmul.f32 %v662, %v663
        %v665 = vsub.f32 1.0, %v664
        %v666 = vmul.f32 %v663, %v665
        %v667 = vadd.f32 %v663, %v666
        %vm668 = vweird.f32 %v662
        %vm669 = vweird.f32 %v663
        %vm670 = vmor %vm668, %vm669
        %v671 = vsel %vm670, %v663, %v667
        %v672 = vand.u32 2147483647, %v662
        %vm673 = vcmp.eq.f32.partialorder %v672, 8.507059e+37
        %v674 = vand.u32 %v662, 2147483648
        %v675 = vor.u32 1.1754944e-38, %v674
        %v676 = vsel %vm673, %v675, %v671
        %v677 = vmul.f32 %v659, %v676
        %678 = vrot.lane.b32.xlu0 %v543, 56
        %v679 = vpop.permute.xlu0 %678
        %v682 = vsel %vm549, %v677, 0
        %684 = vmatpush.msra.mxu0 0.0
        %685 = vmatpush.msra.mxu0 0.0
        %686 = vmatpush.msra.mxu0 0.0
        %687 = vmatpush.msra.mxu0 0.0
        %688 = vmatpush.msra.mxu0 0.0
        %689 = vmatpush.msra.mxu0 0.0
        %690 = vmatpush.msra.mxu0 0.0
        %691 = vmatpush.msra.mxu0 0.0
        %692 = vmatpush.msra.mxu0 0.0
        %693 = vmatpush.msra.mxu0 0.0
        %694 = vmatpush.msra.mxu0 0.0
        %695 = vmatpush.msra.mxu0 0.0
        %696 = vmatpush.msra.mxu0 0.0
        %697 = vmatpush.msra.mxu0 0.0
        %698 = vmatpush.msra.mxu0 0.0
        %699 = vmatpush.msra.mxu0 %v679
        %700 = vmatmul.f32.gmra.mxu0 %v682
        %v701 = vpop.f32.mrf.mxu0
        %v702 = vadd.f32 0.0, %v701
        %703 = vdwg.mxu0
        %v704 = vld [vmem:[%s5 + $0x8] sm:$0xff]
        %v706 = vsel %vm549, %v702, 0
        %708 = vmatpush.msra.mxu0 0.0
        %709 = vmatpush.msra.mxu0 0.0
        %710 = vmatpush.msra.mxu0 0.0
        %711 = vmatpush.msra.mxu0 0.0
        %712 = vmatpush.msra.mxu0 0.0
        %713 = vmatpush.msra.mxu0 0.0
        %714 = vmatpush.msra.mxu0 0.0
        %715 = vmatpush.msra.mxu0 0.0
        %716 = vmatpush.msra.mxu0 0.0
        %717 = vmatpush.msra.mxu0 0.0
        %718 = vmatpush.msra.mxu0 0.0
        %719 = vmatpush.msra.mxu0 0.0
        %720 = vmatpush.msra.mxu0 0.0
        %721 = vmatpush.msra.mxu0 0.0
        %722 = vmatpush.msra.mxu0 0.0
        %723 = vmatpush.msra.mxu0 %v704
        %724 = vmatmul.f32.gmra.mxu0 %v706
        %v725 = vpop.f32.mrf.mxu0
        %v726 = vadd.f32 0.0, %v725
        %727 = vdwg.mxu0
        %v729 = vsel %vm549, %v623, 0
        %731 = vmatpush.msra.mxu0 0.0
        %732 = vmatpush.msra.mxu0 0.0
        %733 = vmatpush.msra.mxu0 0.0
        %734 = vmatpush.msra.mxu0 0.0
        %735 = vmatpush.msra.mxu0 0.0
        %736 = vmatpush.msra.mxu0 0.0
        %737 = vmatpush.msra.mxu0 0.0
        %738 = vmatpush.msra.mxu0 0.0
        %739 = vmatpush.msra.mxu0 0.0
        %740 = vmatpush.msra.mxu0 0.0
        %741 = vmatpush.msra.mxu0 0.0
        %742 = vmatpush.msra.mxu0 0.0
        %743 = vmatpush.msra.mxu0 0.0
        %744 = vmatpush.msra.mxu0 0.0
        %745 = vmatpush.msra.mxu0 0.0
        %746 = vmatpush.msra.mxu0 %v625
        %747 = vmatmul.f32.gmra.mxu0 %v729
        %v748 = vpop.f32.mrf.mxu0
        %v749 = vadd.f32 %v726, %v748
        %750 = vdwg.mxu0
        %751 = vrot.lane.b32.xlu0 %v545, 112
        %v752 = vpop.permute.xlu0 %751
        %753 = vrot.lane.b32.xlu0 %v543, 80
        %v754 = vpop.permute.xlu0 %753
        %v755 = vsel %vm549, %v752, 0
        %v757 = vsel %vm549, %v754, 0
        %759 = vmatpush.xpose.msra.mxu0 0.0
        %760 = vmatpush.xpose.msra.mxu0 0.0
        %761 = vmatpush.xpose.msra.mxu0 0.0
        %762 = vmatpush.xpose.msra.mxu0 0.0
        %763 = vmatpush.xpose.msra.mxu0 0.0
        %764 = vmatpush.xpose.msra.mxu0 0.0
        %765 = vmatpush.xpose.msra.mxu0 0.0
        %766 = vmatpush.xpose.msra.mxu0 0.0
        %767 = vmatpush.xpose.msra.mxu0 0.0
        %768 = vmatpush.xpose.msra.mxu0 0.0
        %769 = vmatpush.xpose.msra.mxu0 0.0
        %770 = vmatpush.xpose.msra.mxu0 0.0
        %771 = vmatpush.xpose.msra.mxu0 0.0
        %772 = vmatpush.xpose.msra.mxu0 0.0
        %773 = vmatpush.xpose.msra.mxu0 0.0
        %774 = vmatpush.xpose.msra.mxu0 %v757
        %775 = vmatmul.f32.gmra.mxu0 %v755
        %v776 = vpop.f32.mrf.mxu0
        %v777 = vadd.f32 0.0, %v776
        %778 = vdwg.mxu0
        %v779 = vsel %vm549, %v777, -inf
        %780 = vmax.xlane.f32.xlu0 %v779
        %v781 = vpop.xlane.xlu0 %780
        %v782 = vsub.f32 %v777, %v781
        %v783 = vmul.f32 %v782, 1.442695
        %v784 = vpow.pop %v783
        %v785 = vsel %vm549, %v784, 0.0
        %786 = vadd.xlane.f32.xlu0 %v785
        %v787 = vpop.xlane.xlu0 %786
        %v788 = vrcp.pop %v787
        %v789 = vmul.f32 %v787, %v788
        %v790 = vsub.f32 1.0, %v789
        %v791 = vmul.f32 %v788, %v790
        %v792 = vadd.f32 %v788, %v791
        %vm793 = vweird.f32 %v787
        %vm794 = vweird.f32 %v788
        %vm795 = vmor %vm793, %vm794
        %v796 = vsel %vm795, %v788, %v792
        %v797 = vand.u32 2147483647, %v787
        %vm798 = vcmp.eq.f32.partialorder %v797, 8.507059e+37
        %v799 = vand.u32 %v787, 2147483648
        %v800 = vor.u32 1.1754944e-38, %v799
        %v801 = vsel %vm798, %v800, %v796
        %v802 = vmul.f32 %v784, %v801
        %803 = vrot.lane.b32.xlu0 %v543, 48
        %v804 = vpop.permute.xlu0 %803
        %v807 = vsel %vm549, %v802, 0
        %809 = vmatpush.msra.mxu0 0.0
        %810 = vmatpush.msra.mxu0 0.0
        %811 = vmatpush.msra.mxu0 0.0
        %812 = vmatpush.msra.mxu0 0.0
        %813 = vmatpush.msra.mxu0 0.0
        %814 = vmatpush.msra.mxu0 0.0
        %815 = vmatpush.msra.mxu0 0.0
        %816 = vmatpush.msra.mxu0 0.0
        %817 = vmatpush.msra.mxu0 0.0
        %818 = vmatpush.msra.mxu0 0.0
        %819 = vmatpush.msra.mxu0 0.0
        %820 = vmatpush.msra.mxu0 0.0
        %821 = vmatpush.msra.mxu0 0.0
        %822 = vmatpush.msra.mxu0 0.0
        %823 = vmatpush.msra.mxu0 0.0
        %824 = vmatpush.msra.mxu0 %v804
        %825 = vmatmul.f32.gmra.mxu0 %v807
        %v826 = vpop.f32.mrf.mxu0
        %v827 = vadd.f32 0.0, %v826
        %828 = vdwg.mxu0
        %v829 = vld [vmem:[%s5 + $0x10] sm:$0xff]
        %v831 = vsel %vm549, %v827, 0
        %833 = vmatpush.msra.mxu0 0.0
        %834 = vmatpush.msra.mxu0 0.0
        %835 = vmatpush.msra.mxu0 0.0
        %836 = vmatpush.msra.mxu0 0.0
        %837 = vmatpush.msra.mxu0 0.0
        %838 = vmatpush.msra.mxu0 0.0
        %839 = vmatpush.msra.mxu0 0.0
        %840 = vmatpush.msra.mxu0 0.0
        %841 = vmatpush.msra.mxu0 0.0
        %842 = vmatpush.msra.mxu0 0.0
        %843 = vmatpush.msra.mxu0 0.0
        %844 = vmatpush.msra.mxu0 0.0
        %845 = vmatpush.msra.mxu0 0.0
        %846 = vmatpush.msra.mxu0 0.0
        %847 = vmatpush.msra.mxu0 0.0
        %848 = vmatpush.msra.mxu0 %v829
        %849 = vmatmul.f32.gmra.mxu0 %v831
        %v850 = vpop.f32.mrf.mxu0
        %v851 = vadd.f32 0.0, %v850
        %852 = vdwg.mxu0
        %v853 = vadd.f32 %v749, %v851
        %854 = vrot.lane.b32.xlu0 %v545, 104
        %v855 = vpop.permute.xlu0 %854
        %856 = vrot.lane.b32.xlu0 %v543, 72
        %v857 = vpop.permute.xlu0 %856
        %v858 = vsel %vm549, %v855, 0
        %v860 = vsel %vm549, %v857, 0
        %862 = vmatpush.xpose.msra.mxu0 0.0
        %863 = vmatpush.xpose.msra.mxu0 0.0
        %864 = vmatpush.xpose.msra.mxu0 0.0
        %865 = vmatpush.xpose.msra.mxu0 0.0
        %866 = vmatpush.xpose.msra.mxu0 0.0
        %867 = vmatpush.xpose.msra.mxu0 0.0
        %868 = vmatpush.xpose.msra.mxu0 0.0
        %869 = vmatpush.xpose.msra.mxu0 0.0
        %870 = vmatpush.xpose.msra.mxu0 0.0
        %871 = vmatpush.xpose.msra.mxu0 0.0
        %872 = vmatpush.xpose.msra.mxu0 0.0
        %873 = vmatpush.xpose.msra.mxu0 0.0
        %874 = vmatpush.xpose.msra.mxu0 0.0
        %875 = vmatpush.xpose.msra.mxu0 0.0
        %876 = vmatpush.xpose.msra.mxu0 0.0
        %877 = vmatpush.xpose.msra.mxu0 %v860
        %878 = vmatmul.f32.gmra.mxu0 %v858
        %v879 = vpop.f32.mrf.mxu0
        %v880 = vadd.f32 0.0, %v879
        %881 = vdwg.mxu0
        %v882 = vsel %vm549, %v880, -inf
        %883 = vmax.xlane.f32.xlu0 %v882
        %v884 = vpop.xlane.xlu0 %883
        %v885 = vsub.f32 %v880, %v884
        %v886 = vmul.f32 %v885, 1.442695
        %v887 = vpow.pop %v886
        %v888 = vsel %vm549, %v887, 0.0
        %889 = vadd.xlane.f32.xlu0 %v888
        %v890 = vpop.xlane.xlu0 %889
        %v891 = vrcp.pop %v890
        %v892 = vmul.f32 %v890, %v891
        %v893 = vsub.f32 1.0, %v892
        %v894 = vmul.f32 %v891, %v893
        %v895 = vadd.f32 %v891, %v894
        %vm896 = vweird.f32 %v890
        %vm897 = vweird.f32 %v891
        %vm898 = vmor %vm896, %vm897
        %v899 = vsel %vm898, %v891, %v895
        %v900 = vand.u32 2147483647, %v890
        %vm901 = vcmp.eq.f32.partialorder %v900, 8.507059e+37
        %v902 = vand.u32 %v890, 2147483648
        %v903 = vor.u32 1.1754944e-38, %v902
        %v904 = vsel %vm901, %v903, %v899
        %v905 = vmul.f32 %v887, %v904
        %906 = vrot.lane.b32.xlu0 %v543, 40
        %v907 = vpop.permute.xlu0 %906
        %v910 = vsel %vm549, %v905, 0
        %912 = vmatpush.msra.mxu0 0.0
        %913 = vmatpush.msra.mxu0 0.0
        %914 = vmatpush.msra.mxu0 0.0
        %915 = vmatpush.msra.mxu0 0.0
        %916 = vmatpush.msra.mxu0 0.0
        %917 = vmatpush.msra.mxu0 0.0
        %918 = vmatpush.msra.mxu0 0.0
        %919 = vmatpush.msra.mxu0 0.0
        %920 = vmatpush.msra.mxu0 0.0
        %921 = vmatpush.msra.mxu0 0.0
        %922 = vmatpush.msra.mxu0 0.0
        %923 = vmatpush.msra.mxu0 0.0
        %924 = vmatpush.msra.mxu0 0.0
        %925 = vmatpush.msra.mxu0 0.0
        %926 = vmatpush.msra.mxu0 0.0
        %927 = vmatpush.msra.mxu0 %v907
        %928 = vmatmul.f32.gmra.mxu0 %v910
        %v929 = vpop.f32.mrf.mxu0
        %v930 = vadd.f32 0.0, %v929
        %931 = vdwg.mxu0
        %v932 = vld [vmem:[%s5 + $0x18] sm:$0xff]
        %v934 = vsel %vm549, %v930, 0
        %936 = vmatpush.msra.mxu0 0.0
        %937 = vmatpush.msra.mxu0 0.0
        %938 = vmatpush.msra.mxu0 0.0
        %939 = vmatpush.msra.mxu0 0.0
        %940 = vmatpush.msra.mxu0 0.0
        %941 = vmatpush.msra.mxu0 0.0
        %942 = vmatpush.msra.mxu0 0.0
        %943 = vmatpush.msra.mxu0 0.0
        %944 = vmatpush.msra.mxu0 0.0
        %945 = vmatpush.msra.mxu0 0.0
        %946 = vmatpush.msra.mxu0 0.0
        %947 = vmatpush.msra.mxu0 0.0
        %948 = vmatpush.msra.mxu0 0.0
        %949 = vmatpush.msra.mxu0 0.0
        %950 = vmatpush.msra.mxu0 0.0
        %951 = vmatpush.msra.mxu0 %v932
        %952 = vmatmul.f32.gmra.mxu0 %v934
        %v953 = vpop.f32.mrf.mxu0
        %v954 = vadd.f32 0.0, %v953
        %955 = vdwg.mxu0
        %v956 = vadd.f32 %v853, %v954
        %v957 = vld [vmem:[%s6] sm:$0x1]
        %v959 = vperm.slane %v957, 0
        %v961 = vadd.f32 %v956, %v959
        %v962 = vadd.f32 %v473, %v961
        %v963 = vsel %vm474, %v962, 0.0
        %964 = vadd.xlane.f32.xlu0 %v963
        %v965 = vpop.xlane.xlu0 %964
        %v966 = vmul.f32 %v965, %v484
        %v967 = vsub.f32 %v962, %v966
        %v968 = vmul.f32 %v967, %v967
        %v969 = vsel %vm474, %v968, 0.0
        %970 = vadd.xlane.f32.xlu0 %v969
        %v971 = vpop.xlane.xlu0 %970
        %v972 = vmul.f32 %v971, %v484
        %v973 = vadd.f32 %v972, 1e-05
        %v974 = vrsqrt.pop %v973
        %v975 = vmul.f32 %v974, %v973
        %v976 = vmul.f32 %v975, %v974
        %v977 = vmul.f32 0.5, %v976
        %v978 = vsub.f32 1.5, %v977
        %v979 = vmul.f32 %v974, %v978
        %vm980 = vweird.f32 %v973
        %vm981 = vweird.f32 %v974
        %vm982 = vmor %vm980, %vm981
        %v983 = vsel %vm982, %v974, %v979
        %v984 = vmul.f32 %v967, %v983
        %v985 = vld [vmem:[%s7] sm:$0x1]
        %v987 = vperm.slane %v985, 0
        %v989 = vmul.f32 %v984, %v987
        %v990 = vld [vmem:[%s8] sm:$0x1]
        %v992 = vperm.slane %v990, 0
        %v994 = vadd.f32 %v989, %v992
        %v995 = vld [vmem:[%s9] sm:$0xff]
        %v996 = vld [vmem:[%s9 + $0x8] sm:$0xff]
        %v997 = vld [vmem:[%s9 + $0x10] sm:$0xff]
        %v998 = vld [vmem:[%s9 + $0x18] sm:$0xff]
        %v999 = vld [vmem:[%s10] sm:$0x1]
        %v1001 = vperm.slane %v999, 0
        %v1004 = vsel %vm474, %v994, 0
        %1006 = vmatpush.msra.mxu0 0.0
        %1007 = vmatpush.msra.mxu0 0.0
        %1008 = vmatpush.msra.mxu0 0.0
        %1009 = vmatpush.msra.mxu0 0.0
        %1010 = vmatpush.msra.mxu0 0.0
        %1011 = vmatpush.msra.mxu0 0.0
        %1012 = vmatpush.msra.mxu0 0.0
        %1013 = vmatpush.msra.mxu0 0.0
        %1014 = vmatpush.msra.mxu0 0.0
        %1015 = vmatpush.msra.mxu0 0.0
        %1016 = vmatpush.msra.mxu0 0.0
        %1017 = vmatpush.msra.mxu0 0.0
        %1018 = vmatpush.msra.mxu0 %v998
        %1019 = vmatpush.msra.mxu0 %v997
        %1020 = vmatpush.msra.mxu0 %v996
        %1021 = vmatpush.msra.mxu0 %v995
        %1022 = vmatmul.f32.gmra.mxu0 %v1004
        %v1023 = vpop.f32.mrf.mxu0
        %v1024 = vadd.f32 %v1001, %v1023
        %1025 = vdwg.mxu0
        %v1026 = vmul.f32 %v1024, 1.702
        %v1027 = vxor.u32 %v1026, 2147483648
        %v1028 = vmul.f32 %v1027, 1.442695
        %v1029 = vpow.pop %v1028
        %v1030 = vadd.f32 %v1029, 1.0
        %v1031 = vrcp.pop %v1030
        %v1032 = vmul.f32 %v1030, %v1031
        %v1033 = vsub.f32 1.0, %v1032
        %v1034 = vmul.f32 %v1031, %v1033
        %v1035 = vadd.f32 %v1031, %v1034
        %vm1036 = vweird.f32 %v1030
        %vm1037 = vweird.f32 %v1031
        %vm1038 = vmor %vm1036, %vm1037
        %v1039 = vsel %vm1038, %v1031, %v1035
        %v1040 = vand.u32 2147483647, %v1030
        %vm1041 = vcmp.eq.f32.partialorder %v1040, 8.507059e+37
        %v1042 = vand.u32 %v1030, 2147483648
        %v1043 = vor.u32 1.1754944e-38, %v1042
        %v1044 = vsel %vm1041, %v1043, %v1039
        %v1045 = vmul.f32 1.0, %v1044
        %v1046 = vmul.f32 %v1024, %v1045
        %v1047 = vld [vmem:[%s11] sm:$0xff]
        %v1048 = vld [vmem:[%s11 + $0x8] sm:$0xff]
        %v1049 = vld [vmem:[%s11 + $0x10] sm:$0xff]
        %v1050 = vld [vmem:[%s11 + $0x18] sm:$0xff]
        %v1051 = vld [vmem:[%s11 + $0x20] sm:$0xff]
        %v1052 = vld [vmem:[%s11 + $0x28] sm:$0xff]
        %v1053 = vld [vmem:[%s11 + $0x30] sm:$0xff]
        %v1054 = vld [vmem:[%s11 + $0x38] sm:$0xff]
        %v1055 = vld [vmem:[%s12] sm:$0x1]
        %v1057 = vperm.slane %v1055, 0
        %vm1059 = vcmask 523264
        %v1061 = vsel %vm1059, %v1046, 0
        %1063 = vmatpush.msra.mxu0 0.0
        %1064 = vmatpush.msra.mxu0 0.0
        %1065 = vmatpush.msra.mxu0 0.0
        %1066 = vmatpush.msra.mxu0 0.0
        %1067 = vmatpush.msra.mxu0 0.0
        %1068 = vmatpush.msra.mxu0 0.0
        %1069 = vmatpush.msra.mxu0 0.0
        %1070 = vmatpush.msra.mxu0 0.0
        %1071 = vmatpush.msra.mxu0 %v1054
        %1072 = vmatpush.msra.mxu0 %v1053
        %1073 = vmatpush.msra.mxu0 %v1052
        %1074 = vmatpush.msra.mxu0 %v1051
        %1075 = vmatpush.msra.mxu0 %v1050
        %1076 = vmatpush.msra.mxu0 %v1049
        %1077 = vmatpush.msra.mxu0 %v1048
        %1078 = vmatpush.msra.mxu0 %v1047
        %1079 = vmatmul.f32.gmra.mxu0 %v1061
        %v1080 = vpop.f32.mrf.mxu0
        %v1081 = vadd.f32 %v1057, %v1080
        %1082 = vdwg.mxu0
        %v1083 = vadd.f32 %v962, %v1081
        %1084 = vst.msk [vmem:[%s472] sm:$0xff] %vm474, %v1083
        %s1085 = sand.u32 %s317, 1
        %s1086 = scalar_lea.sflag [#allocation4], %s1085
        %s1087 = sand.u32 %s317, 1
        %s1088 = smul.addr %s1087, 8
        %s1089 = scalar_lea.vmem [#allocation7], %s1088
        // Predicated region
        $region81: #{tpu_custom_call.1} parent=71 // pred_check
          %p1090 = pneg %p327
        $region82: #{tpu_custom_call.1} parent=71 // pred_check_branch
          %1092 = sbr.rel (%p1090) target = $region84
        $region83: #{tpu_custom_call.1} parent=71 // pred_region
          %1094 = vsyncadd %s1086, 0
          %s1095 = smul.addr %s31, 8
          %s1096 = scalar_lea.hbm %s13, %s1095
          %s1098 = sshll.u32 %s1089, 4
          %s1099 = int_to_ptr.vmem [resolvable:$true] %s1098
          %s1100 = sshll.u32 %s1096, 4
          %s1101 = int_to_ptr.hbm [resolvable:$true] %s1100
          %1103 = dma.vmem_to_hbm [thread:$0]  %s1099, 128, %s1101, %s1086
        $region84: #{tpu_custom_call.1} parent=71 // pred_fallthru
          _
      $region72: #{tpu_custom_call.1} parent=5 // pred_fallthru
        _
      %p1104 = scmp.le.s32.totalorder 2, %s26
      // Predicated region
      $region85: #{tpu_custom_call.1} parent=5 // pred_check
        %p1105 = pneg %p1104
      $region86: #{tpu_custom_call.1} parent=5 // pred_check_branch
        %1107 = sbr.rel (%p1105) target = $region88
      $region87: #{tpu_custom_call.1} parent=5 // pred_region
        %s1108 = ssub.s32 %s26, 2
        // Predicated region
        $region89: #{tpu_custom_call.1} parent=87 // pred_check
          %p1109 = pneg %p333
        $region90: #{tpu_custom_call.1} parent=87 // pred_check_branch
          %1111 = sbr.rel (%p1109) target = $region92
        $region91: #{tpu_custom_call.1} parent=87 // pred_region
          %s1112 = sand.u32 %s318, 1
          %s1113 = scalar_lea.sflag [#allocation4], %s1112
          %s1114 = sand.u32 %s318, 1
          %s1115 = smul.addr %s1114, 8
          %s1116 = scalar_lea.vmem [#allocation7], %s1115
          %1118 = dma.done %s1113, 128
        $region92: #{tpu_custom_call.1} parent=87 // pred_fallthru
          _
      $region88: #{tpu_custom_call.1} parent=5 // pred_fallthru
        _
    $region6: #{tpu_custom_call.1} parent=1 // loop_footer
      %s30 = sadd.s32 1, %s26
    $region7: #{tpu_custom_call.1} parent=1 // loop_footer_branch
      %25 = sbr.rel target = $region3
    $region8: #{tpu_custom_call.1} parent=1 // loop_exit
      _
    %1119 = vsyncpa [#allocation3], 1
    %s1120 = scalar_lea.sflag [#allocation3], 1
    %1121 = vsyncpa %s1120, 1
    %1122 = vsyncpa [#allocation6], 1
    %1123 = vsyncpa [#allocation4], 1
    %s1124 = scalar_lea.sflag [#allocation4], 1
    %1125 = vsyncpa %s1124, 1

</llo_original>
